<compile_context>
chip_gen: v7x
topology: tpu7x:2x2x1
jax: 0.10.0
libtpu: 0.0.40
codegen_flags: <defaults>
</compile_context>

<pallas_src>
import functools

import jax
import jax.numpy as jnp
from jax import lax
from jax.experimental import pallas as pl
from jax.experimental.pallas import tpu as pltpu


def _round_up(n, m):
    return ((n + m - 1) // m) * m


# ----------------------------------------------------------------------------
# Fused kernel: l1 + l2 + l3 + dense for one batch tile (4 matmuls total)
# ----------------------------------------------------------------------------
def _predictor_kernel(x_ref, w1_ref, b1_ref, w2_ref, b2_ref, w3_ref, b3_ref,
                      wd_ref, bd_ref, o_ref):
    """Shapes (per grid step):
      x_ref  : (T, 81)    raw input rows, (c, kh, w) flattened
      w1_ref : (81, 288)  expanded l1 weight (BN folded)   b1_ref : (1, 288)
      w2_ref : (288, 192) expanded l2 weight (BN folded)   b2_ref : (1, 192)
      w3_ref : (192, 128) expanded l3 weight (BN folded)   b3_ref : (1, 128)
      wd_ref : (1, 128)   dense weight row                 bd_ref : (1, 1)
      o_ref  : (1, 1, T)  lane-dense (transposed) output row
    """
    f32 = jnp.float32
    x = x_ref[...]                                                  # (T, 81)
    h1 = jnp.maximum(
        jnp.dot(x, w1_ref[...], preferred_element_type=f32) + b1_ref[...], 0.0)
    h2 = jnp.maximum(
        jnp.dot(h1, w2_ref[...], preferred_element_type=f32) + b2_ref[...], 0.0)
    h3 = jnp.maximum(
        jnp.dot(h2, w3_ref[...], preferred_element_type=f32) + b3_ref[...], 0.0)
    # dense(128 -> 1), contracted along the feature axis of BOTH operands so
    # no (T, 128) transpose is materialized; result is the lane-dense (1, T).
    out_row = lax.dot_general(
        wd_ref[...], h3, dimension_numbers=(((1,), (1,)), ((), ())),
        preferred_element_type=f32) + bd_ref[...]
    o_ref[...] = out_row.reshape(o_ref.shape).astype(o_ref.dtype)


# ----------------------------------------------------------------------------
# Parameter initialization (deterministic, synthetic)
# ----------------------------------------------------------------------------
def _conv_bn_params(key, cout, cin, kh, kw):
    ks = jax.random.split(key, 6)
    scale = 1.0 / (cin * kh * kw) ** 0.5
    f32 = lambda a: a.astype(jnp.float32)
    return dict(
        w=f32(scale * jax.random.normal(ks[0], (cout, cin, kh, kw))),
        cb=f32(scale * jax.random.normal(ks[1], (cout,))),
        gamma=f32(1.0 + 0.1 * jax.random.normal(ks[2], (cout,))),
        beta=f32(0.1 * jax.random.normal(ks[3], (cout,))),
        mean=f32(0.1 * jax.random.normal(ks[4], (cout,))),
        var=f32(1.0 + 0.1 * jnp.abs(jax.random.normal(ks[5], (cout,)))),
    )


def init_params(key):
    k1, k2, k3, k4, k5 = jax.random.split(key, 5)
    return {
        "l1": _conv_bn_params(k1, 32, 1, 3, 3),
        "l2": _conv_bn_params(k2, 64, 32, 1, 3),
        "l3": _conv_bn_params(k3, 128, 64, 1, 3),
        "wd": (0.1 * jax.random.normal(k4, (1, 128))).astype(jnp.float32),
        "bd": (0.1 * jax.random.normal(k5, (1,))).astype(jnp.float32),
    }


# ----------------------------------------------------------------------------
# One-time parameter prep: fold eval-mode BN, expand per-position conv weights
# into single dense matmul weights (runs once, outside the forward path).
# ----------------------------------------------------------------------------
def prepare_params(p, eps=1e-5):
    def fold(lp):
        s = lp["gamma"] / jnp.sqrt(lp["var"] + eps)          # per-out-channel
        b = (lp["cb"] - lp["mean"]) * s + lp["beta"]
        return s, b

    s1, b1 = fold(p["l1"])
    s2, b2 = fold(p["l2"])
    s3, b3 = fold(p["l3"])

    # l1: fold the 9 non-overlapping (3,3) patch positions into one (81, 288)
    # weight: row = kh*27 + w, col = ow*32 + cout (zero outside own patch).
    w1f = jnp.transpose(p["l1"]["w"][:, 0] * s1[:, None, None], (1, 2, 0))  # (kh,kwp,cout)
    w1_big = jnp.zeros((3, 27, 9, 32), jnp.float32)
    for ow in range(9):
        w1_big = w1_big.at[:, 3 * ow:3 * ow + 3, ow, :].set(w1f)
    w1_big = w1_big.reshape(81, 288)

    # l2: (cout,cin,1,kw) -> (288, 192): row = ow*32 + cin, col = j*64 + cout,
    # non-zero only where ow == 3*j + kw.
    w2f = p["l2"]["w"][:, :, 0, :] * s2[:, None, None]                # (cout,cin,kw)
    w2_big = jnp.zeros((9, 32, 3, 64), jnp.float32)
    for j in range(3):
        for kw in range(3):
            w2_big = w2_big.at[3 * j + kw, :, j, :].set(w2f[:, :, kw].T)
    w2_big = w2_big.reshape(288, 192)

    # l3: fully dense after expansion: row = j*64 + cin, col = cout.
    w3f = p["l3"]["w"][:, :, 0, :] * s3[:, None, None]                # (cout,cin,j)
    w3_big = jnp.transpose(w3f, (2, 1, 0)).reshape(192, 128)

    return dict(
        w1=w1_big, b1=jnp.tile(b1, 9).reshape(1, 288),
        w2=w2_big, b2=jnp.tile(b2, 3).reshape(1, 192),
        w3=w3_big, b3=b3.reshape(1, 128),
        wd=p["wd"], bd=p["bd"].reshape(1, 1),
    )


# ----------------------------------------------------------------------------
# predictor forward (single fused Pallas call)
# ----------------------------------------------------------------------------
def predictor_forward(x, prep, bz, tile_b=512):
    # Tile choice: lane/sublane aligned; don't over-pad tiny batches; keep
    # >= 2 grid steps when the batch allows so both v7x TensorCores get work.
    tile_b = max(128, min(tile_b, _round_up((bz + 1) // 2, 128)))
    bz_pad = _round_up(bz, tile_b)
    n_tiles = bz_pad // tile_b

    # Raw input, (c,kh,w) flattened to 81 lanes; no im2col / transpose in HBM.
    xf = jnp.pad(x.reshape(bz, 81), ((0, bz_pad - bz), (0, 0)))

    out = pl.pallas_call(
        _predictor_kernel,
        out_shape=jax.ShapeDtypeStruct((n_tiles, 1, tile_b), jnp.float32),
        grid=(n_tiles,),
        in_specs=[
            pl.BlockSpec((tile_b, 81), lambda i: (i, 0)),
            pl.BlockSpec((81, 288), lambda i: (0, 0)),
            pl.BlockSpec((1, 288), lambda i: (0, 0)),
            pl.BlockSpec((288, 192), lambda i: (0, 0)),
            pl.BlockSpec((1, 192), lambda i: (0, 0)),
            pl.BlockSpec((192, 128), lambda i: (0, 0)),
            pl.BlockSpec((1, 128), lambda i: (0, 0)),
            pl.BlockSpec((1, 128), lambda i: (0, 0)),
            pl.BlockSpec((1, 1), lambda i: (0, 0)),
        ],
        out_specs=pl.BlockSpec((1, 1, tile_b), lambda i: (i, 0, 0)),
        compiler_params=pltpu.CompilerParams(
            dimension_semantics=("parallel",)),
    )(xf, prep["w1"], prep["b1"], prep["w2"], prep["b2"],
      prep["w3"], prep["b3"], prep["wd"], prep["bd"])

    return out.reshape(bz_pad)[:bz].reshape(bz, 1)


# ----------------------------------------------------------------------------
# Pure-JAX reference (lax.conv) for correctness checking
# ----------------------------------------------------------------------------
def reference(x, p, bz, eps=1e-5):
    def conv_bn_relu(y, lp, stride):
        y = lax.conv_general_dilated(
            y, lp["w"], window_strides=stride, padding="VALID",
            dimension_numbers=("NCHW", "OIHW", "NCHW"),
            precision=lax.Precision.HIGHEST)
        y = y + lp["cb"].reshape(1, -1, 1, 1)
        r = lambda a: a.reshape(1, -1, 1, 1)
        y = (y - r(lp["mean"])) / jnp.sqrt(r(lp["var"]) + eps) * r(lp["gamma"]) + r(lp["beta"])
        return jnp.maximum(y, 0.0)

    x1 = conv_bn_relu(x, p["l1"], (3, 3))
    x2 = conv_bn_relu(x1, p["l2"], (1, 3))
    x3 = conv_bn_relu(x2, p["l3"], (1, 3))
    x3 = x3.reshape(bz, 128)
    return x3 @ p["wd"].T + p["bd"]


if __name__ == "__main__":
    key = jax.random.PRNGKey(0)
    kx, kp, kx2 = jax.random.split(key, 3)

    params = init_params(kp)
    prep = prepare_params(params)        # one-time BN fold + weight expansion

    # Smallest input consistent with the forward pass (spatial collapses to
    # 1x1 so the reshape to (bz, 128) is valid): (bz, 1, 3, 27).
    bz = 2
    x = jax.random.normal(kx, (bz, 1, 3, 27), dtype=jnp.float32)
    fwd = jax.jit(functools.partial(predictor_forward, bz=bz))
    out = jax.block_until_ready(fwd(x, prep))
    assert out.shape == (bz, 1)
    ref = reference(x, params, bz)
    if not jnp.allclose(out, ref, atol=1e-3, rtol=1e-2):
        raise AssertionError(f"mismatch (bz=2): pallas={out} ref={ref}")

    # Multi-tile / ragged-batch path (2 grid steps + batch padding).
    bz2 = 384
    x2 = jax.random.normal(kx2, (bz2, 1, 3, 27), dtype=jnp.float32)
    fwd2 = jax.jit(functools.partial(predictor_forward, bz=bz2))
    out2 = jax.block_until_ready(fwd2(x2, prep))
    ref2 = reference(x2, params, bz2)
    if not jnp.allclose(out2, ref2, atol=1e-3, rtol=1e-2):
        err = jnp.max(jnp.abs(out2 - ref2))
        raise AssertionError(f"mismatch (bz=384): max abs err {err}")

    print("KERNEL_OK")
</pallas_src>

<mosaic_0001>
module attributes {stable_mosaic.version = 11 : i64} {
  func.func @_predictor_kernel(%arg0: i32, %arg1: memref<128x81xf32, #tpu.memory_space<vmem>>, %arg2: memref<81x288xf32, #tpu.memory_space<vmem>>, %arg3: memref<1x288xf32, #tpu.memory_space<vmem>>, %arg4: memref<288x192xf32, #tpu.memory_space<vmem>>, %arg5: memref<1x192xf32, #tpu.memory_space<vmem>>, %arg6: memref<192x128xf32, #tpu.memory_space<vmem>>, %arg7: memref<1x128xf32, #tpu.memory_space<vmem>>, %arg8: memref<1x128xf32, #tpu.memory_space<vmem>>, %arg9: memref<1x1xf32, #tpu.memory_space<vmem>>, %arg10: memref<1x1x128xf32, #tpu.memory_space<vmem>>) attributes {dimension_semantics = [#tpu.dimension_semantics<parallel>], iteration_bounds = array<i64: 1>, scalar_prefetch = 0 : i64, scratch_operands = 0 : i64, tpu.core_type = #tpu.core_type<tc>, window_params = [{transform_indices = @transform_0, window_bounds = array<i64: 128, 81>}, {pipeline_mode = #tpu.pipeline_mode<synchronous>, transform_indices = @transform_1, window_bounds = array<i64: 81, 288>}, {pipeline_mode = #tpu.pipeline_mode<synchronous>, transform_indices = @transform_2, window_bounds = array<i64: 1, 288>}, {pipeline_mode = #tpu.pipeline_mode<synchronous>, transform_indices = @transform_3, window_bounds = array<i64: 288, 192>}, {pipeline_mode = #tpu.pipeline_mode<synchronous>, transform_indices = @transform_4, window_bounds = array<i64: 1, 192>}, {pipeline_mode = #tpu.pipeline_mode<synchronous>, transform_indices = @transform_5, window_bounds = array<i64: 192, 128>}, {pipeline_mode = #tpu.pipeline_mode<synchronous>, transform_indices = @transform_6, window_bounds = array<i64: 1, 128>}, {pipeline_mode = #tpu.pipeline_mode<synchronous>, transform_indices = @transform_7, window_bounds = array<i64: 1, 128>}, {pipeline_mode = #tpu.pipeline_mode<synchronous>, transform_indices = @transform_8, window_bounds = array<i64: 1, 1>}, {transform_indices = @transform_9, window_bounds = array<i64: 1, 1, 128>}]} {
    %c0 = arith.constant 0 : index
    %c0_0 = arith.constant 0 : index
    %0 = vector.load %arg1[%c0, %c0_0] : memref<128x81xf32, #tpu.memory_space<vmem>>, vector<128x81xf32>
    %c0_1 = arith.constant 0 : index
    %c0_2 = arith.constant 0 : index
    %1 = vector.load %arg2[%c0_1, %c0_2] : memref<81x288xf32, #tpu.memory_space<vmem>>, vector<81x288xf32>
    %cst = arith.constant dense<0.000000e+00> : vector<128x288xf32>
    %2 = tpu.matmul %0, %1, %cst {dimension_numbers = #tpu.dot_dimension_numbers<[1], [0], [0], [1], [0, 0, 1, 1], [], []>} : vector<128x81xf32>, vector<81x288xf32>, vector<128x288xf32> -> vector<128x288xf32>
    %c0_3 = arith.constant 0 : index
    %c0_4 = arith.constant 0 : index
    %3 = vector.load %arg3[%c0_3, %c0_4] : memref<1x288xf32, #tpu.memory_space<vmem>>, vector<1x288xf32>
    %4 = vector.broadcast %3 : vector<1x288xf32> to vector<128x288xf32>
    %5 = arith.addf %2, %4 : vector<128x288xf32>
    %cst_5 = arith.constant 0.000000e+00 : f32
    %6 = vector.broadcast %cst_5 : f32 to vector<128x288xf32>
    %7 = arith.maximumf %5, %6 : vector<128x288xf32>
    %c0_6 = arith.constant 0 : index
    %c0_7 = arith.constant 0 : index
    %8 = vector.load %arg4[%c0_6, %c0_7] : memref<288x192xf32, #tpu.memory_space<vmem>>, vector<288x192xf32>
    %cst_8 = arith.constant dense<0.000000e+00> : vector<128x192xf32>
    %9 = tpu.matmul %7, %8, %cst_8 {dimension_numbers = #tpu.dot_dimension_numbers<[1], [0], [0], [1], [0, 0, 1, 1], [], []>} : vector<128x288xf32>, vector<288x192xf32>, vector<128x192xf32> -> vector<128x192xf32>
    %c0_9 = arith.constant 0 : index
    %c0_10 = arith.constant 0 : index
    %10 = vector.load %arg5[%c0_9, %c0_10] : memref<1x192xf32, #tpu.memory_space<vmem>>, vector<1x192xf32>
    %11 = vector.broadcast %10 : vector<1x192xf32> to vector<128x192xf32>
    %12 = arith.addf %9, %11 : vector<128x192xf32>
    %cst_11 = arith.constant 0.000000e+00 : f32
    %13 = vector.broadcast %cst_11 : f32 to vector<128x192xf32>
    %14 = arith.maximumf %12, %13 : vector<128x192xf32>
    %c0_12 = arith.constant 0 : index
    %c0_13 = arith.constant 0 : index
    %15 = vector.load %arg6[%c0_12, %c0_13] : memref<192x128xf32, #tpu.memory_space<vmem>>, vector<192x128xf32>
    %cst_14 = arith.constant dense<0.000000e+00> : vector<128x128xf32>
    %16 = tpu.matmul %14, %15, %cst_14 {dimension_numbers = #tpu.dot_dimension_numbers<[1], [0], [0], [1], [0, 0, 1, 1], [], []>} : vector<128x192xf32>, vector<192x128xf32>, vector<128x128xf32> -> vector<128x128xf32>
    %c0_15 = arith.constant 0 : index
    %c0_16 = arith.constant 0 : index
    %17 = vector.load %arg7[%c0_15, %c0_16] : memref<1x128xf32, #tpu.memory_space<vmem>>, vector<1x128xf32>
    %18 = vector.broadcast %17 : vector<1x128xf32> to vector<128x128xf32>
    %19 = arith.addf %16, %18 : vector<128x128xf32>
    %cst_17 = arith.constant 0.000000e+00 : f32
    %20 = vector.broadcast %cst_17 : f32 to vector<128x128xf32>
    %21 = arith.maximumf %19, %20 : vector<128x128xf32>
    %c0_18 = arith.constant 0 : index
    %c0_19 = arith.constant 0 : index
    %22 = vector.load %arg8[%c0_18, %c0_19] : memref<1x128xf32, #tpu.memory_space<vmem>>, vector<1x128xf32>
    %cst_20 = arith.constant dense<0.000000e+00> : vector<1x128xf32>
    %23 = tpu.matmul %22, %21, %cst_20 {dimension_numbers = #tpu.dot_dimension_numbers<[1], [1], [0], [0], [0, 0, 1, 0], [], []>} : vector<1x128xf32>, vector<128x128xf32>, vector<1x128xf32> -> vector<1x128xf32>
    %c0_21 = arith.constant 0 : index
    %c0_22 = arith.constant 0 : index
    %24 = vector.load %arg9[%c0_21, %c0_22] : memref<1x1xf32, #tpu.memory_space<vmem>>, vector<1x1xf32>
    %25 = vector.broadcast %24 : vector<1x1xf32> to vector<1x128xf32>
    %26 = arith.addf %23, %25 : vector<1x128xf32>
    %27 = vector.shape_cast %26 : vector<1x128xf32> to vector<1x1x128xf32>
    %c0_23 = arith.constant 0 : index
    %c0_24 = arith.constant 0 : index
    %c0_25 = arith.constant 0 : index
    %28 = vector.load %arg10[%c0_23, %c0_24, %c0_25] : memref<1x1x128xf32, #tpu.memory_space<vmem>>, vector<1x1x128xf32>
    tpu.vector_store %arg10[%c0_23, %c0_24, %c0_25], %27 {strides = array<i32>} : memref<1x1x128xf32, #tpu.memory_space<vmem>>, vector<1x1x128xf32>,
    return
  }
  func.func @transform_0(%arg0: i32) -> (i32, i32) {
    %c0_i32 = arith.constant 0 : i32
    %c0_i32_0 = arith.constant 0 : i32
    return %arg0, %c0_i32 : i32, i32
  }
  func.func @transform_1(%arg0: i32) -> (i32, i32) {
    %c0_i32 = arith.constant 0 : i32
    %c0_i32_0 = arith.constant 0 : i32
    %c0_i32_1 = arith.constant 0 : i32
    return %c0_i32, %c0_i32_0 : i32, i32
  }
  func.func @transform_2(%arg0: i32) -> (i32, i32) {
    %c0_i32 = arith.constant 0 : i32
    %c0_i32_0 = arith.constant 0 : i32
    %c0_i32_1 = arith.constant 0 : i32
    return %c0_i32, %c0_i32_0 : i32, i32
  }
  func.func @transform_3(%arg0: i32) -> (i32, i32) {
    %c0_i32 = arith.constant 0 : i32
    %c0_i32_0 = arith.constant 0 : i32
    %c0_i32_1 = arith.constant 0 : i32
    return %c0_i32, %c0_i32_0 : i32, i32
  }
  func.func @transform_4(%arg0: i32) -> (i32, i32) {
    %c0_i32 = arith.constant 0 : i32
    %c0_i32_0 = arith.constant 0 : i32
    %c0_i32_1 = arith.constant 0 : i32
    return %c0_i32, %c0_i32_0 : i32, i32
  }
  func.func @transform_5(%arg0: i32) -> (i32, i32) {
    %c0_i32 = arith.constant 0 : i32
    %c0_i32_0 = arith.constant 0 : i32
    %c0_i32_1 = arith.constant 0 : i32
    return %c0_i32, %c0_i32_0 : i32, i32
  }
  func.func @transform_6(%arg0: i32) -> (i32, i32) {
    %c0_i32 = arith.constant 0 : i32
    %c0_i32_0 = arith.constant 0 : i32
    %c0_i32_1 = arith.constant 0 : i32
    return %c0_i32, %c0_i32_0 : i32, i32
  }
  func.func @transform_7(%arg0: i32) -> (i32, i32) {
    %c0_i32 = arith.constant 0 : i32
    %c0_i32_0 = arith.constant 0 : i32
    %c0_i32_1 = arith.constant 0 : i32
    return %c0_i32, %c0_i32_0 : i32, i32
  }
  func.func @transform_8(%arg0: i32) -> (i32, i32) {
    %c0_i32 = arith.constant 0 : i32
    %c0_i32_0 = arith.constant 0 : i32
    %c0_i32_1 = arith.constant 0 : i32
    return %c0_i32, %c0_i32_0 : i32, i32
  }
  func.func @transform_9(%arg0: i32) -> (i32, i32, i32) {
    %c0_i32 = arith.constant 0 : i32
    %c0_i32_0 = arith.constant 0 : i32
    %c0_i32_1 = arith.constant 0 : i32
    return %arg0, %c0_i32, %c0_i32_0 : i32, i32, i32
  }
}

</mosaic_0001>

<llo_original>
// kernel: predictor_forward.1
$region0: #{predictor_forward.1}
  #allocation0 [shape = 'u32[]', space=smem, size = 0x4, offset = 0x4, fixed_abs, tag = 'smem constant byte address 0x4 - core index']
  #allocation1 [shape = 'u32[144,128]{1,0:T(1,128)}', space=vmem, size = 0x12000, scoped, tag = 'internal scratch']
  #allocation2 [shape = 'f32[1,1]{1,0:T(1,128)S(1)}', space=vmem, size = 0x200, scoped, tag = 'scoped memory for predictor_forward.1']
  %s0 = inlined_call_operand.vmem [shape: f32[128,81], index: 0, kind: input, shape index: {}]
  %s1 = inlined_call_operand.hbm [shape: f32[81,288], index: 1, kind: input, shape index: {}]
  %s2 = inlined_call_operand.vmem [shape: f32[1,288], index: 2, kind: input, shape index: {}]
  %s3 = inlined_call_operand.hbm [shape: f32[288,192], index: 3, kind: input, shape index: {}]
  %s4 = inlined_call_operand.vmem [shape: f32[1,192], index: 4, kind: input, shape index: {}]
  %s5 = inlined_call_operand.hbm [shape: f32[192,128], index: 5, kind: input, shape index: {}]
  %s6 = inlined_call_operand.vmem [shape: f32[1,128], index: 6, kind: input, shape index: {}]
  %s7 = inlined_call_operand.vmem [shape: f32[1,128], index: 7, kind: input, shape index: {}]
  %s8 = inlined_call_operand.<no memory space> [shape: f32[1,1], index: 8, kind: input, shape index: {}]
  %s9 = inlined_call_operand.vmem [shape: f32[1,1,128], index: 9, kind: output, shape index: {}]
  %s10 = sld [smem:[#allocation0]]
  $region58: #{predictor_forward.1} parent=0
    _
  %s12 = ssub.s32 1, %s10
  %s13 = scalar_select 0, %s12, %s10
  %v14 = vstv %s8
  %15 = vst [vmem:[#allocation2] sm:$0x1] %v14
  $region1: #{predictor_forward.1} parent=0
    #allocation3 [shape = 'u8[135168]{0}', space=vmem, size = 0x21000, scoped, tag = 'input window, operand 1, single buffered']
    #allocation4 [shape = 's32[1]{0}', space=sflag, size = 0x4, scoped, tag = 'scoped memory for predictor_forward.1']
    #allocation5 [shape = 'u8[294912]{0}', space=vmem, size = 0x48000, scoped, tag = 'input window, operand 3, single buffered']
    #allocation6 [shape = 's32[1]{0}', space=sflag, size = 0x4, scoped, tag = 'scoped memory for predictor_forward.1']
    #allocation7 [shape = 'u8[98304]{0}', space=vmem, size = 0x18000, scoped, tag = 'input window, operand 5, single buffered']
    %16 = vsyncpa [#allocation4], 0
    %17 = vsyncpa [#allocation6], 0
    // Predicated region
    $region2: #{predictor_forward.1} parent=1 // pred_check
      _
    $region3: #{predictor_forward.1} parent=1 // pred_check_branch
      %19 = sbr.rel (0) target = $region5
    $region4: #{predictor_forward.1} parent=1 // pred_region
      _
    $region5: #{predictor_forward.1} parent=1 // pred_fallthru
      _
    // Predicated region
    $region6: #{predictor_forward.1} parent=1 // pred_check
      _
    $region7: #{predictor_forward.1} parent=1 // pred_check_branch
      %21 = sbr.rel (0) target = $region9
    $region8: #{predictor_forward.1} parent=1 // pred_region
      %s23 = ssub.s32 4224, 4224
      %24 = vsyncadd [#allocation4], %s23
      %s25 = sshll.u32 [#allocation3], 4
      %s26 = int_to_ptr.vmem [resolvable:$true] %s25
      %31 = dma.hbm_to_vmem [thread:$0]  %s1, 4224, %s26, [#allocation4], 384, 384, 24
    $region9: #{predictor_forward.1} parent=1 // pred_fallthru
      _
    // Predicated region
    $region10: #{predictor_forward.1} parent=1 // pred_check
      _
    $region11: #{predictor_forward.1} parent=1 // pred_check_branch
      %33 = sbr.rel (0) target = $region13
    $region12: #{predictor_forward.1} parent=1 // pred_region
      _
    $region13: #{predictor_forward.1} parent=1 // pred_fallthru
      _
    // Predicated region
    $region14: #{predictor_forward.1} parent=1 // pred_check
      _
    $region15: #{predictor_forward.1} parent=1 // pred_check_branch
      %35 = sbr.rel (0) target = $region17
    $region16: #{predictor_forward.1} parent=1 // pred_region
      %s37 = ssub.s32 9216, 9216
      %38 = vsyncadd [#allocation6], %s37
      %s39 = sshll.u32 [#allocation5], 4
      %s40 = int_to_ptr.vmem [resolvable:$true] %s39
      %45 = dma.hbm_to_vmem [thread:$0]  %s3, 9216, %s40, [#allocation6], 256, 256, 16
    $region17: #{predictor_forward.1} parent=1 // pred_fallthru
      _
    // Predicated region
    $region18: #{predictor_forward.1} parent=1 // pred_check
      _
    $region19: #{predictor_forward.1} parent=1 // pred_check_branch
      %47 = sbr.rel (0) target = $region21
    $region20: #{predictor_forward.1} parent=1 // pred_region
      _
    $region21: #{predictor_forward.1} parent=1 // pred_fallthru
      _
    // Predicated region
    $region22: #{predictor_forward.1} parent=1 // pred_check
      _
    $region23: #{predictor_forward.1} parent=1 // pred_check_branch
      %49 = sbr.rel (0) target = $region25
    $region24: #{predictor_forward.1} parent=1 // pred_region
      %s51 = ssub.s32 3072, 3072
      %52 = vsyncadd [#allocation6], %s51
      %s53 = sshll.u32 [#allocation7], 4
      %s54 = int_to_ptr.vmem [resolvable:$true] %s53
      %59 = dma.hbm_to_vmem [thread:$0]  %s5, 3072, %s54, [#allocation6], 128, 128, 8
    $region25: #{predictor_forward.1} parent=1 // pred_fallthru
      _
    // Predicated region
    $region26: #{predictor_forward.1} parent=1 // pred_check
      _
    $region27: #{predictor_forward.1} parent=1 // pred_check_branch
      %61 = sbr.rel (0) target = $region29
    $region28: #{predictor_forward.1} parent=1 // pred_region
      _
    $region29: #{predictor_forward.1} parent=1 // pred_fallthru
      _
    // Predicated region
    $region30: #{predictor_forward.1} parent=1 // pred_check
      _
    $region31: #{predictor_forward.1} parent=1 // pred_check_branch
      %63 = sbr.rel (0) target = $region33
    $region32: #{predictor_forward.1} parent=1 // pred_region
      _
    $region33: #{predictor_forward.1} parent=1 // pred_fallthru
      _
    // Predicated region
    $region34: #{predictor_forward.1} parent=1 // pred_check
      _
    $region35: #{predictor_forward.1} parent=1 // pred_check_branch
      %65 = sbr.rel (0) target = $region37
    $region36: #{predictor_forward.1} parent=1 // pred_region
      _
    $region37: #{predictor_forward.1} parent=1 // pred_fallthru
      _
    // Predicated region
    $region38: #{predictor_forward.1} parent=1 // pred_check
      _
    $region39: #{predictor_forward.1} parent=1 // pred_check_branch
      %67 = sbr.rel (0) target = $region41
    $region40: #{predictor_forward.1} parent=1 // pred_region
      %68 = dma.done [#allocation4], 4224
    $region41: #{predictor_forward.1} parent=1 // pred_fallthru
      _
    // Predicated region
    $region42: #{predictor_forward.1} parent=1 // pred_check
      _
    $region43: #{predictor_forward.1} parent=1 // pred_check_branch
      %70 = sbr.rel (0) target = $region45
    $region44: #{predictor_forward.1} parent=1 // pred_region
      %71 = dma.done [#allocation6], 9216
    $region45: #{predictor_forward.1} parent=1 // pred_fallthru
      _
    // Predicated region
    $region46: #{predictor_forward.1} parent=1 // pred_check
      _
    $region47: #{predictor_forward.1} parent=1 // pred_check_branch
      %73 = sbr.rel (0) target = $region49
    $region48: #{predictor_forward.1} parent=1 // pred_region
      %74 = dma.done [#allocation6], 3072
    $region49: #{predictor_forward.1} parent=1 // pred_fallthru
      _
    %v75 = vld [vmem:[%s0] sm:$0xff]
    %v76 = vld [vmem:[%s0 + $0x8] sm:$0xff]
    %v77 = vld [vmem:[%s0 + $0x10] sm:$0xff]
    %v78 = vld [vmem:[%s0 + $0x18] sm:$0xff]
    %v79 = vld [vmem:[%s0 + $0x20] sm:$0xff]
    %v80 = vld [vmem:[%s0 + $0x28] sm:$0xff]
    %v81 = vld [vmem:[%s0 + $0x30] sm:$0xff]
    %v82 = vld [vmem:[%s0 + $0x38] sm:$0xff]
    %v83 = vld [vmem:[%s0 + $0x40] sm:$0xff]
    %v84 = vld [vmem:[%s0 + $0x48] sm:$0xff]
    %v85 = vld [vmem:[%s0 + $0x50] sm:$0xff]
    %v86 = vld [vmem:[%s0 + $0x58] sm:$0xff]
    %v87 = vld [vmem:[%s0 + $0x60] sm:$0xff]
    %v88 = vld [vmem:[%s0 + $0x68] sm:$0xff]
    %v89 = vld [vmem:[%s0 + $0x70] sm:$0xff]
    %v90 = vld [vmem:[%s0 + $0x78] sm:$0xff]
    %v91 = vld [vmem:[#allocation3] sm:$0xff]
    %v92 = vld [vmem:[#allocation3 + $0x8] sm:$0xff]
    %v93 = vld [vmem:[#allocation3 + $0x10] sm:$0xff]
    %v94 = vld [vmem:[#allocation3 + $0x18] sm:$0xff]
    %v95 = vld [vmem:[#allocation3 + $0x20] sm:$0xff]
    %v96 = vld [vmem:[#allocation3 + $0x28] sm:$0xff]
    %v97 = vld [vmem:[#allocation3 + $0x30] sm:$0xff]
    %v98 = vld [vmem:[#allocation3 + $0x38] sm:$0xff]
    %v99 = vld [vmem:[#allocation3 + $0x40] sm:$0xff]
    %v100 = vld [vmem:[#allocation3 + $0x48] sm:$0xff]
    %v101 = vld [vmem:[#allocation3 + $0x50] sm:$0xff]
    %v102 = vld [vmem:[#allocation3 + $0x58] sm:$0xff]
    %v103 = vld [vmem:[#allocation3 + $0x60] sm:$0xff]
    %v104 = vld [vmem:[#allocation3 + $0x68] sm:$0xff]
    %v105 = vld [vmem:[#allocation3 + $0x70] sm:$0xff]
    %v106 = vld [vmem:[#allocation3 + $0x78] sm:$0xff]
    %v107 = vld [vmem:[#allocation3 + $0x80] sm:$0xff]
    %v108 = vld [vmem:[#allocation3 + $0x88] sm:$0xff]
    %v109 = vld [vmem:[#allocation3 + $0x90] sm:$0xff]
    %v110 = vld [vmem:[#allocation3 + $0x98] sm:$0xff]
    %v111 = vld [vmem:[#allocation3 + $0xa0] sm:$0xff]
    %v112 = vld [vmem:[#allocation3 + $0xa8] sm:$0xff]
    %v113 = vld [vmem:[#allocation3 + $0xb0] sm:$0xff]
    %v114 = vld [vmem:[#allocation3 + $0xb8] sm:$0xff]
    %v115 = vld [vmem:[#allocation3 + $0xc0] sm:$0xff]
    %v116 = vld [vmem:[#allocation3 + $0xc8] sm:$0xff]
    %v117 = vld [vmem:[#allocation3 + $0xd0] sm:$0xff]
    %v118 = vld [vmem:[#allocation3 + $0xd8] sm:$0xff]
    %v119 = vld [vmem:[#allocation3 + $0xe0] sm:$0xff]
    %v120 = vld [vmem:[#allocation3 + $0xe8] sm:$0xff]
    %v121 = vld [vmem:[#allocation3 + $0xf0] sm:$0x1]
    %v122 = vld [vmem:[#allocation3 + $0xf8] sm:$0x1]
    %v123 = vld [vmem:[#allocation3 + $0x100] sm:$0x1]
    %v124 = vld [vmem:[%s2] sm:$0x7]
    %v126 = vlaneseq
    %v127 = vshrl.u32 %v126, 7
    %v128 = vsub.s32 0, %v127
    %v129 = vrot.slane %v124, %v128
    %v130 = vlaneseq
    %v131 = vshrl.u32 %v130, 7
    %v132 = vsub.s32 1, %v131
    %v133 = vrot.slane %v124, %v132
    %v134 = vlaneseq
    %v135 = vshrl.u32 %v134, 7
    %v136 = vsub.s32 2, %v135
    %v137 = vrot.slane %v124, %v136
    %vm141 = vcmask 662528
    %v143 = vsel %vm141, %v75, 0
    %v146 = vsel %vm141, %v76, 0
    %v149 = vsel %vm141, %v77, 0
    %v152 = vsel %vm141, %v78, 0
    %v155 = vsel %vm141, %v79, 0
    %v158 = vsel %vm141, %v80, 0
    %v161 = vsel %vm141, %v81, 0
    %v164 = vsel %vm141, %v82, 0
    %v167 = vsel %vm141, %v83, 0
    %v170 = vsel %vm141, %v84, 0
    %v173 = vsel %vm141, %v85, 0
    %v176 = vsel %vm141, %v86, 0
    %v179 = vsel %vm141, %v87, 0
    %v182 = vsel %vm141, %v88, 0
    %v185 = vsel %vm141, %v89, 0
    %v188 = vsel %vm141, %v90, 0
    %vm190 = vcmask 1040384
    %v192 = vsel %vm190, %v121, 0
    %v195 = vsel %vm190, %v122, 0
    %v198 = vsel %vm190, %v123, 0
    %200 = vmatprep.subr.mxu0 %v92
    %201 = vmatpush1.msra.mxu0 %v91
    %202 = vmatprep.subr.mxu0 %v95
    %203 = vmatpush1.msra.mxu0 %v94
    %204 = vmatprep.subr.mxu0 %v98
    %205 = vmatpush1.msra.mxu0 %v97
    %206 = vmatprep.subr.mxu0 %v101
    %207 = vmatpush1.msra.mxu0 %v100
    %208 = vmatprep.subr.mxu0 %v104
    %209 = vmatpush1.msra.mxu0 %v103
    %210 = vmatprep.subr.mxu0 %v107
    %211 = vmatpush1.msra.mxu0 %v106
    %212 = vmatprep.subr.mxu0 %v110
    %213 = vmatpush1.msra.mxu0 %v109
    %214 = vmatprep.subr.mxu0 %v113
    %215 = vmatpush1.msra.mxu0 %v112
    %216 = vmatprep.subr.mxu0 %v116
    %217 = vmatpush1.msra.mxu0 %v115
    %218 = vmatprep.subr.mxu0 %v119
    %219 = vmatpush1.msra.mxu0 %v118
    %220 = vmatprep.subr.mxu0 %v195
    %221 = vmatpush1.msra.mxu0 %v192
    %222 = vmatprep.subr.mxu0 0.0
    %223 = vmatpush1.msra.mxu0 0.0
    %224 = vmatprep.subr.mxu0 0.0
    %225 = vmatpush1.msra.mxu0 0.0
    %226 = vmatprep.subr.mxu0 0.0
    %227 = vmatpush1.msra.mxu0 0.0
    %228 = vmatprep.subr.mxu0 0.0
    %229 = vmatpush1.msra.mxu0 0.0
    %230 = vmatprep.subr.mxu0 0.0
    %231 = vmatpush1.msra.mxu0 0.0
    %232 = vmatprep.subr.mxu0 0.0
    %233 = vmatpush1.msra.mxu0 0.0
    %234 = vmatprep.subr.mxu0 0.0
    %235 = vmatpush1.msra.mxu0 0.0
    %236 = vmatprep.subr.mxu0 0.0
    %237 = vmatpush1.msra.mxu0 0.0
    %238 = vmatprep.subr.mxu0 0.0
    %239 = vmatpush1.msra.mxu0 0.0
    %240 = vmatprep.subr.mxu0 0.0
    %241 = vmatpush1.msra.mxu0 0.0
    %242 = vmatprep.subr.mxu0 0.0
    %243 = vmatpush1.msra.mxu0 0.0
    %244 = vmatprep.subr.mxu0 0.0
    %245 = vmatpush1.msra.mxu0 0.0
    %246 = vmatprep.subr.mxu0 0.0
    %247 = vmatpush1.msra.mxu0 0.0
    %248 = vmatprep.subr.mxu0 0.0
    %249 = vmatpush1.msra.mxu0 0.0
    %250 = vmatprep.subr.mxu0 0.0
    %251 = vmatpush1.msra.mxu0 0.0
    %252 = vmatprep.subr.mxu0 0.0
    %253 = vmatpush1.msra.mxu0 0.0
    %254 = vmatprep.subr.mxu0 0.0
    %255 = vmatpush1.msra.mxu0 0.0
    %256 = vmatprep.subr.mxu0 0.0
    %257 = vmatpush1.msra.mxu0 0.0
    %258 = vmatprep.subr.mxu0 0.0
    %259 = vmatpush1.msra.mxu0 0.0
    %260 = vmatprep.subr.mxu0 0.0
    %261 = vmatpush1.msra.mxu0 0.0
    %262 = vmatprep.subr.mxu0 0.0
    %263 = vmatpush1.msra.mxu0 0.0
    %264 = vmatprep.mubr.f32.mxu0 0.0
    %265 = vmatmul.mubr.f32.gmra.mrb[0].mxu0 %v143
    %v266 = vpop.f32.mrb[0].mxu0
    %v267 = vadd.f32 %v129, %v266
    %v268 = vpop.f32.mrb[0].mxu0
    %v269 = vadd.f32 %v133, %v268
    %270 = vmatprep.mubr.f32.mxu0 0.0
    %271 = vmatmul.mubr.f32.gmra.mrb[0].mxu0 %v146
    %v272 = vpop.f32.mrb[0].mxu0
    %v273 = vadd.f32 %v129, %v272
    %v274 = vpop.f32.mrb[0].mxu0
    %v275 = vadd.f32 %v133, %v274
    %276 = vmatprep.mubr.f32.mxu0 0.0
    %277 = vmatmul.mubr.f32.gmra.mrb[0].mxu0 %v149
    %v278 = vpop.f32.mrb[0].mxu0
    %v279 = vadd.f32 %v129, %v278
    %v280 = vpop.f32.mrb[0].mxu0
    %v281 = vadd.f32 %v133, %v280
    %282 = vmatprep.mubr.f32.mxu0 0.0
    %283 = vmatmul.mubr.f32.gmra.mrb[0].mxu0 %v152
    %v284 = vpop.f32.mrb[0].mxu0
    %v285 = vadd.f32 %v129, %v284
    %v286 = vpop.f32.mrb[0].mxu0
    %v287 = vadd.f32 %v133, %v286
    %288 = vmatprep.mubr.f32.mxu0 0.0
    %289 = vmatmul.mubr.f32.gmra.mrb[0].mxu0 %v155
    %v290 = vpop.f32.mrb[0].mxu0
    %v291 = vadd.f32 %v129, %v290
    %v292 = vpop.f32.mrb[0].mxu0
    %v293 = vadd.f32 %v133, %v292
    %294 = vmatprep.mubr.f32.mxu0 0.0
    %295 = vmatmul.mubr.f32.gmra.mrb[0].mxu0 %v158
    %v296 = vpop.f32.mrb[0].mxu0
    %v297 = vadd.f32 %v129, %v296
    %v298 = vpop.f32.mrb[0].mxu0
    %v299 = vadd.f32 %v133, %v298
    %300 = vmatprep.mubr.f32.mxu0 0.0
    %301 = vmatmul.mubr.f32.gmra.mrb[0].mxu0 %v161
    %v302 = vpop.f32.mrb[0].mxu0
    %v303 = vadd.f32 %v129, %v302
    %v304 = vpop.f32.mrb[0].mxu0
    %v305 = vadd.f32 %v133, %v304
    %306 = vmatprep.mubr.f32.mxu0 0.0
    %307 = vmatmul.mubr.f32.gmra.mrb[0].mxu0 %v164
    %v308 = vpop.f32.mrb[0].mxu0
    %v309 = vadd.f32 %v129, %v308
    %v310 = vpop.f32.mrb[0].mxu0
    %v311 = vadd.f32 %v133, %v310
    %312 = vmatprep.mubr.f32.mxu0 0.0
    %313 = vmatmul.mubr.f32.gmra.mrb[0].mxu0 %v167
    %v314 = vpop.f32.mrb[0].mxu0
    %v315 = vadd.f32 %v129, %v314
    %v316 = vpop.f32.mrb[0].mxu0
    %v317 = vadd.f32 %v133, %v316
    %318 = vmatprep.mubr.f32.mxu0 0.0
    %319 = vmatmul.mubr.f32.gmra.mrb[0].mxu0 %v170
    %v320 = vpop.f32.mrb[0].mxu0
    %v321 = vadd.f32 %v129, %v320
    %v322 = vpop.f32.mrb[0].mxu0
    %v323 = vadd.f32 %v133, %v322
    %324 = vmatprep.mubr.f32.mxu0 0.0
    %325 = vmatmul.mubr.f32.gmra.mrb[0].mxu0 %v173
    %v326 = vpop.f32.mrb[0].mxu0
    %v327 = vadd.f32 %v129, %v326
    %v328 = vpop.f32.mrb[0].mxu0
    %v329 = vadd.f32 %v133, %v328
    %330 = vmatprep.mubr.f32.mxu0 0.0
    %331 = vmatmul.mubr.f32.gmra.mrb[0].mxu0 %v176
    %v332 = vpop.f32.mrb[0].mxu0
    %v333 = vadd.f32 %v129, %v332
    %v334 = vpop.f32.mrb[0].mxu0
    %v335 = vadd.f32 %v133, %v334
    %336 = vmatprep.mubr.f32.mxu0 0.0
    %337 = vmatmul.mubr.f32.gmra.mrb[0].mxu0 %v179
    %v338 = vpop.f32.mrb[0].mxu0
    %v339 = vadd.f32 %v129, %v338
    %v340 = vpop.f32.mrb[0].mxu0
    %v341 = vadd.f32 %v133, %v340
    %342 = vmatprep.mubr.f32.mxu0 0.0
    %343 = vmatmul.mubr.f32.gmra.mrb[0].mxu0 %v182
    %v344 = vpop.f32.mrb[0].mxu0
    %v345 = vadd.f32 %v129, %v344
    %v346 = vpop.f32.mrb[0].mxu0
    %v347 = vadd.f32 %v133, %v346
    %348 = vmatprep.mubr.f32.mxu0 0.0
    %349 = vmatmul.mubr.f32.gmra.mrb[0].mxu0 %v185
    %v350 = vpop.f32.mrb[0].mxu0
    %v351 = vadd.f32 %v129, %v350
    %v352 = vpop.f32.mrb[0].mxu0
    %v353 = vadd.f32 %v133, %v352
    %354 = vmatprep.mubr.f32.mxu0 0.0
    %355 = vmatmul.mubr.f32.gmra.mrb[0].mxu0 %v188
    %v356 = vpop.f32.mrb[0].mxu0
    %v357 = vadd.f32 %v129, %v356
    %v358 = vpop.f32.mrb[0].mxu0
    %v359 = vadd.f32 %v133, %v358
    %360 = vdwg.mxu0
    %361 = vmatprep.subr.mxu0 0.0
    %362 = vmatpush1.msra.mxu0 %v93
    %363 = vmatprep.subr.mxu0 0.0
    %364 = vmatpush1.msra.mxu0 %v96
    %365 = vmatprep.subr.mxu0 0.0
    %366 = vmatpush1.msra.mxu0 %v99
    %367 = vmatprep.subr.mxu0 0.0
    %368 = vmatpush1.msra.mxu0 %v102
    %369 = vmatprep.subr.mxu0 0.0
    %370 = vmatpush1.msra.mxu0 %v105
    %371 = vmatprep.subr.mxu0 0.0
    %372 = vmatpush1.msra.mxu0 %v108
    %373 = vmatprep.subr.mxu0 0.0
    %374 = vmatpush1.msra.mxu0 %v111
    %375 = vmatprep.subr.mxu0 0.0
    %376 = vmatpush1.msra.mxu0 %v114
    %377 = vmatprep.subr.mxu0 0.0
    %378 = vmatpush1.msra.mxu0 %v117
    %379 = vmatprep.subr.mxu0 0.0
    %380 = vmatpush1.msra.mxu0 %v120
    %381 = vmatprep.subr.mxu0 0.0
    %382 = vmatpush1.msra.mxu0 %v198
    %383 = vmatprep.subr.mxu0 0.0
    %384 = vmatpush1.msra.mxu0 0.0
    %385 = vmatprep.subr.mxu0 0.0
    %386 = vmatpush1.msra.mxu0 0.0
    %387 = vmatprep.subr.mxu0 0.0
    %388 = vmatpush1.msra.mxu0 0.0
    %389 = vmatprep.subr.mxu0 0.0
    %390 = vmatpush1.msra.mxu0 0.0
    %391 = vmatprep.subr.mxu0 0.0
    %392 = vmatpush1.msra.mxu0 0.0
    %393 = vmatprep.subr.mxu0 0.0
    %394 = vmatpush1.msra.mxu0 0.0
    %395 = vmatprep.subr.mxu0 0.0
    %396 = vmatpush1.msra.mxu0 0.0
    %397 = vmatprep.subr.mxu0 0.0
    %398 = vmatpush1.msra.mxu0 0.0
    %399 = vmatprep.subr.mxu0 0.0
    %400 = vmatpush1.msra.mxu0 0.0
    %401 = vmatprep.subr.mxu0 0.0
    %402 = vmatpush1.msra.mxu0 0.0
    %403 = vmatprep.subr.mxu0 0.0
    %404 = vmatpush1.msra.mxu0 0.0
    %405 = vmatprep.subr.mxu0 0.0
    %406 = vmatpush1.msra.mxu0 0.0
    %407 = vmatprep.subr.mxu0 0.0
    %408 = vmatpush1.msra.mxu0 0.0
    %409 = vmatprep.subr.mxu0 0.0
    %410 = vmatpush1.msra.mxu0 0.0
    %411 = vmatprep.subr.mxu0 0.0
    %412 = vmatpush1.msra.mxu0 0.0
    %413 = vmatprep.subr.mxu0 0.0
    %414 = vmatpush1.msra.mxu0 0.0
    %415 = vmatprep.subr.mxu0 0.0
    %416 = vmatpush1.msra.mxu0 0.0
    %417 = vmatprep.subr.mxu0 0.0
    %418 = vmatpush1.msra.mxu0 0.0
    %419 = vmatprep.subr.mxu0 0.0
    %420 = vmatpush1.msra.mxu0 0.0
    %421 = vmatprep.subr.mxu0 0.0
    %422 = vmatpush1.msra.mxu0 0.0
    %423 = vmatprep.subr.mxu0 0.0
    %424 = vmatpush1.msra.mxu0 0.0
    %425 = vmatprep.mubr.f32.mxu0 0.0
    %426 = vmatmul.mubr.f32.gmra.mrb[0].mxu0 %v143
    %v427 = vpop.f32.mrb[0].mxu0
    %v428 = vadd.f32 %v137, %v427
    %v429 = vpop.f32.mrb[0].mxu0
    %430 = vmatprep.mubr.f32.mxu0 0.0
    %431 = vmatmul.mubr.f32.gmra.mrb[0].mxu0 %v146
    %v432 = vpop.f32.mrb[0].mxu0
    %v433 = vadd.f32 %v137, %v432
    %v434 = vpop.f32.mrb[0].mxu0
    %435 = vmatprep.mubr.f32.mxu0 0.0
    %436 = vmatmul.mubr.f32.gmra.mrb[0].mxu0 %v149
    %v437 = vpop.f32.mrb[0].mxu0
    %v438 = vadd.f32 %v137, %v437
    %v439 = vpop.f32.mrb[0].mxu0
    %440 = vmatprep.mubr.f32.mxu0 0.0
    %441 = vmatmul.mubr.f32.gmra.mrb[0].mxu0 %v152
    %v442 = vpop.f32.mrb[0].mxu0
    %v443 = vadd.f32 %v137, %v442
    %v444 = vpop.f32.mrb[0].mxu0
    %445 = vmatprep.mubr.f32.mxu0 0.0
    %446 = vmatmul.mubr.f32.gmra.mrb[0].mxu0 %v155
    %v447 = vpop.f32.mrb[0].mxu0
    %v448 = vadd.f32 %v137, %v447
    %v449 = vpop.f32.mrb[0].mxu0
    %450 = vmatprep.mubr.f32.mxu0 0.0
    %451 = vmatmul.mubr.f32.gmra.mrb[0].mxu0 %v158
    %v452 = vpop.f32.mrb[0].mxu0
    %v453 = vadd.f32 %v137, %v452
    %v454 = vpop.f32.mrb[0].mxu0
    %455 = vmatprep.mubr.f32.mxu0 0.0
    %456 = vmatmul.mubr.f32.gmra.mrb[0].mxu0 %v161
    %v457 = vpop.f32.mrb[0].mxu0
    %v458 = vadd.f32 %v137, %v457
    %v459 = vpop.f32.mrb[0].mxu0
    %460 = vmatprep.mubr.f32.mxu0 0.0
    %461 = vmatmul.mubr.f32.gmra.mrb[0].mxu0 %v164
    %v462 = vpop.f32.mrb[0].mxu0
    %v463 = vadd.f32 %v137, %v462
    %v464 = vpop.f32.mrb[0].mxu0
    %465 = vmatprep.mubr.f32.mxu0 0.0
    %466 = vmatmul.mubr.f32.gmra.mrb[0].mxu0 %v167
    %v467 = vpop.f32.mrb[0].mxu0
    %v468 = vadd.f32 %v137, %v467
    %v469 = vpop.f32.mrb[0].mxu0
    %470 = vmatprep.mubr.f32.mxu0 0.0
    %471 = vmatmul.mubr.f32.gmra.mrb[0].mxu0 %v170
    %v472 = vpop.f32.mrb[0].mxu0
    %v473 = vadd.f32 %v137, %v472
    %v474 = vpop.f32.mrb[0].mxu0
    %475 = vmatprep.mubr.f32.mxu0 0.0
    %476 = vmatmul.mubr.f32.gmra.mrb[0].mxu0 %v173
    %v477 = vpop.f32.mrb[0].mxu0
    %v478 = vadd.f32 %v137, %v477
    %v479 = vpop.f32.mrb[0].mxu0
    %480 = vmatprep.mubr.f32.mxu0 0.0
    %481 = vmatmul.mubr.f32.gmra.mrb[0].mxu0 %v176
    %v482 = vpop.f32.mrb[0].mxu0
    %v483 = vadd.f32 %v137, %v482
    %v484 = vpop.f32.mrb[0].mxu0
    %485 = vmatprep.mubr.f32.mxu0 0.0
    %486 = vmatmul.mubr.f32.gmra.mrb[0].mxu0 %v179
    %v487 = vpop.f32.mrb[0].mxu0
    %v488 = vadd.f32 %v137, %v487
    %v489 = vpop.f32.mrb[0].mxu0
    %490 = vmatprep.mubr.f32.mxu0 0.0
    %491 = vmatmul.mubr.f32.gmra.mrb[0].mxu0 %v182
    %v492 = vpop.f32.mrb[0].mxu0
    %v493 = vadd.f32 %v137, %v492
    %v494 = vpop.f32.mrb[0].mxu0
    %495 = vmatprep.mubr.f32.mxu0 0.0
    %496 = vmatmul.mubr.f32.gmra.mrb[0].mxu0 %v185
    %v497 = vpop.f32.mrb[0].mxu0
    %v498 = vadd.f32 %v137, %v497
    %v499 = vpop.f32.mrb[0].mxu0
    %500 = vmatprep.mubr.f32.mxu0 0.0
    %501 = vmatmul.mubr.f32.gmra.mrb[0].mxu0 %v188
    %v502 = vpop.f32.mrb[0].mxu0
    %v503 = vadd.f32 %v137, %v502
    %v504 = vpop.f32.mrb[0].mxu0
    %505 = vdwg.mxu0
    %v506 = vmax.f32 %v267, 0.0
    %v507 = vmax.f32 %v269, 0.0
    %v508 = vmax.f32 %v428, 0.0
    %v509 = vmax.f32 %v273, 0.0
    %v510 = vmax.f32 %v275, 0.0
    %v511 = vmax.f32 %v433, 0.0
    %v512 = vmax.f32 %v279, 0.0
    %v513 = vmax.f32 %v281, 0.0
    %v514 = vmax.f32 %v438, 0.0
    %v515 = vmax.f32 %v285, 0.0
    %v516 = vmax.f32 %v287, 0.0
    %v517 = vmax.f32 %v443, 0.0
    %v518 = vmax.f32 %v291, 0.0
    %v519 = vmax.f32 %v293, 0.0
    %v520 = vmax.f32 %v448, 0.0
    %v521 = vmax.f32 %v297, 0.0
    %v522 = vmax.f32 %v299, 0.0
    %v523 = vmax.f32 %v453, 0.0
    %v524 = vmax.f32 %v303, 0.0
    %v525 = vmax.f32 %v305, 0.0
    %v526 = vmax.f32 %v458, 0.0
    %v527 = vmax.f32 %v309, 0.0
    %v528 = vmax.f32 %v311, 0.0
    %v529 = vmax.f32 %v463, 0.0
    %v530 = vmax.f32 %v315, 0.0
    %v531 = vmax.f32 %v317, 0.0
    %v532 = vmax.f32 %v468, 0.0
    %v533 = vmax.f32 %v321, 0.0
    %v534 = vmax.f32 %v323, 0.0
    %v535 = vmax.f32 %v473, 0.0
    %v536 = vmax.f32 %v327, 0.0
    %v537 = vmax.f32 %v329, 0.0
    %v538 = vmax.f32 %v478, 0.0
    %v539 = vmax.f32 %v333, 0.0
    %v540 = vmax.f32 %v335, 0.0
    %v541 = vmax.f32 %v483, 0.0
    %v542 = vmax.f32 %v339, 0.0
    %v543 = vmax.f32 %v341, 0.0
    %v544 = vmax.f32 %v488, 0.0
    %v545 = vmax.f32 %v345, 0.0
    %v546 = vmax.f32 %v347, 0.0
    %v547 = vmax.f32 %v493, 0.0
    %v548 = vmax.f32 %v351, 0.0
    %v549 = vmax.f32 %v353, 0.0
    %v550 = vmax.f32 %v498, 0.0
    %v551 = vmax.f32 %v357, 0.0
    %v552 = vmax.f32 %v359, 0.0
    %v553 = vmax.f32 %v503, 0.0
    %v554 = vld [vmem:[#allocation5] sm:$0xff]
    %v555 = vld [vmem:[#allocation5 + $0x8] sm:$0xff]
    %v556 = vld [vmem:[#allocation5 + $0x10] sm:$0xff]
    %v557 = vld [vmem:[#allocation5 + $0x18] sm:$0xff]
    %v558 = vld [vmem:[#allocation5 + $0x20] sm:$0xff]
    %v559 = vld [vmem:[#allocation5 + $0x28] sm:$0xff]
    %v560 = vld [vmem:[#allocation5 + $0x30] sm:$0xff]
    %v561 = vld [vmem:[#allocation5 + $0x38] sm:$0xff]
    %v562 = vld [vmem:[#allocation5 + $0x40] sm:$0xff]
    %v563 = vld [vmem:[#allocation5 + $0x48] sm:$0xff]
    %v564 = vld [vmem:[#allocation5 + $0x50] sm:$0xff]
    %v565 = vld [vmem:[#allocation5 + $0x58] sm:$0xff]
    %v566 = vld [vmem:[#allocation5 + $0x60] sm:$0xff]
    %v567 = vld [vmem:[#allocation5 + $0x68] sm:$0xff]
    %v568 = vld [vmem:[#allocation5 + $0x70] sm:$0xff]
    %v569 = vld [vmem:[#allocation5 + $0x78] sm:$0xff]
    %v570 = vld [vmem:[#allocation5 + $0x80] sm:$0xff]
    %v571 = vld [vmem:[#allocation5 + $0x88] sm:$0xff]
    %v572 = vld [vmem:[#allocation5 + $0x90] sm:$0xff]
    %v573 = vld [vmem:[#allocation5 + $0x98] sm:$0xff]
    %v574 = vld [vmem:[#allocation5 + $0xa0] sm:$0xff]
    %v575 = vld [vmem:[#allocation5 + $0xa8] sm:$0xff]
    %v576 = vld [vmem:[#allocation5 + $0xb0] sm:$0xff]
    %v577 = vld [vmem:[#allocation5 + $0xb8] sm:$0xff]
    %v578 = vld [vmem:[#allocation5 + $0xc0] sm:$0xff]
    %v579 = vld [vmem:[#allocation5 + $0xc8] sm:$0xff]
    %v580 = vld [vmem:[#allocation5 + $0xd0] sm:$0xff]
    %v581 = vld [vmem:[#allocation5 + $0xd8] sm:$0xff]
    %v582 = vld [vmem:[#allocation5 + $0xe0] sm:$0xff]
    %v583 = vld [vmem:[#allocation5 + $0xe8] sm:$0xff]
    %v584 = vld [vmem:[#allocation5 + $0xf0] sm:$0xff]
    %v585 = vld [vmem:[#allocation5 + $0xf8] sm:$0xff]
    %v586 = vld [vmem:[#allocation5 + $0x100] sm:$0xff]
    %v587 = vld [vmem:[#allocation5 + $0x108] sm:$0xff]
    %v588 = vld [vmem:[#allocation5 + $0x110] sm:$0xff]
    %v589 = vld [vmem:[#allocation5 + $0x118] sm:$0xff]
    %v590 = vld [vmem:[#allocation5 + $0x120] sm:$0xff]
    %v591 = vld [vmem:[#allocation5 + $0x128] sm:$0xff]
    %v592 = vld [vmem:[#allocation5 + $0x130] sm:$0xff]
    %v593 = vld [vmem:[#allocation5 + $0x138] sm:$0xff]
    %v594 = vld [vmem:[#allocation5 + $0x140] sm:$0xff]
    %v595 = vld [vmem:[#allocation5 + $0x148] sm:$0xff]
    %v596 = vld [vmem:[#allocation5 + $0x150] sm:$0xff]
    %v597 = vld [vmem:[#allocation5 + $0x158] sm:$0xff]
    %v598 = vld [vmem:[#allocation5 + $0x160] sm:$0xff]
    %v599 = vld [vmem:[#allocation5 + $0x168] sm:$0xff]
    %v600 = vld [vmem:[#allocation5 + $0x170] sm:$0xff]
    %v601 = vld [vmem:[#allocation5 + $0x178] sm:$0xff]
    %v602 = vld [vmem:[#allocation5 + $0x180] sm:$0xff]
    %v603 = vld [vmem:[#allocation5 + $0x188] sm:$0xff]
    %v604 = vld [vmem:[#allocation5 + $0x190] sm:$0xff]
    %v605 = vld [vmem:[#allocation5 + $0x198] sm:$0xff]
    %v606 = vld [vmem:[#allocation5 + $0x1a0] sm:$0xff]
    %v607 = vld [vmem:[#allocation5 + $0x1a8] sm:$0xff]
    %v608 = vld [vmem:[#allocation5 + $0x1b0] sm:$0xff]
    %v609 = vld [vmem:[#allocation5 + $0x1b8] sm:$0xff]
    %v610 = vld [vmem:[#allocation5 + $0x1c0] sm:$0xff]
    %v611 = vld [vmem:[#allocation5 + $0x1c8] sm:$0xff]
    %v612 = vld [vmem:[#allocation5 + $0x1d0] sm:$0xff]
    %v613 = vld [vmem:[#allocation5 + $0x1d8] sm:$0xff]
    %v614 = vld [vmem:[#allocation5 + $0x1e0] sm:$0xff]
    %v615 = vld [vmem:[#allocation5 + $0x1e8] sm:$0xff]
    %v616 = vld [vmem:[#allocation5 + $0x1f0] sm:$0xff]
    %v617 = vld [vmem:[#allocation5 + $0x1f8] sm:$0xff]
    %v618 = vld [vmem:[#allocation5 + $0x200] sm:$0xff]
    %v619 = vld [vmem:[#allocation5 + $0x208] sm:$0xff]
    %v620 = vld [vmem:[#allocation5 + $0x210] sm:$0xff]
    %v621 = vld [vmem:[#allocation5 + $0x218] sm:$0xff]
    %v622 = vld [vmem:[#allocation5 + $0x220] sm:$0xff]
    %v623 = vld [vmem:[#allocation5 + $0x228] sm:$0xff]
    %v624 = vld [vmem:[#allocation5 + $0x230] sm:$0xff]
    %v625 = vld [vmem:[#allocation5 + $0x238] sm:$0xff]
    %v626 = vld [vmem:[%s4] sm:$0x3]
    %v628 = vlaneseq
    %v629 = vshrl.u32 %v628, 7
    %v630 = vsub.s32 0, %v629
    %v631 = vrot.slane %v626, %v630
    %v632 = vlaneseq
    %v633 = vshrl.u32 %v632, 7
    %v634 = vsub.s32 1, %v633
    %v635 = vrot.slane %v626, %v634
    %vm638 = vcmask 261120
    %v640 = vsel %vm638, %v508, 0
    %v643 = vsel %vm638, %v511, 0
    %v646 = vsel %vm638, %v514, 0
    %v649 = vsel %vm638, %v517, 0
    %v652 = vsel %vm638, %v520, 0
    %v655 = vsel %vm638, %v523, 0
    %v658 = vsel %vm638, %v526, 0
    %v661 = vsel %vm638, %v529, 0
    %v664 = vsel %vm638, %v532, 0
    %v667 = vsel %vm638, %v535, 0
    %v670 = vsel %vm638, %v538, 0
    %v673 = vsel %vm638, %v541, 0
    %v676 = vsel %vm638, %v544, 0
    %v679 = vsel %vm638, %v547, 0
    %v682 = vsel %vm638, %v550, 0
    %v685 = vsel %vm638, %v553, 0
    %687 = vmatprep.subr.mxu0 %v555
    %688 = vmatpush1.msra.mxu0 %v554
    %689 = vmatprep.subr.mxu0 %v557
    %690 = vmatpush1.msra.mxu0 %v556
    %691 = vmatprep.subr.mxu0 %v559
    %692 = vmatpush1.msra.mxu0 %v558
    %693 = vmatprep.subr.mxu0 %v561
    %694 = vmatpush1.msra.mxu0 %v560
    %695 = vmatprep.subr.mxu0 %v563
    %696 = vmatpush1.msra.mxu0 %v562
    %697 = vmatprep.subr.mxu0 %v565
    %698 = vmatpush1.msra.mxu0 %v564
    %699 = vmatprep.subr.mxu0 %v567
    %700 = vmatpush1.msra.mxu0 %v566
    %701 = vmatprep.subr.mxu0 %v569
    %702 = vmatpush1.msra.mxu0 %v568
    %703 = vmatprep.subr.mxu0 %v571
    %704 = vmatpush1.msra.mxu0 %v570
    %705 = vmatprep.subr.mxu0 %v573
    %706 = vmatpush1.msra.mxu0 %v572
    %707 = vmatprep.subr.mxu0 %v575
    %708 = vmatpush1.msra.mxu0 %v574
    %709 = vmatprep.subr.mxu0 %v577
    %710 = vmatpush1.msra.mxu0 %v576
    %711 = vmatprep.subr.mxu0 %v579
    %712 = vmatpush1.msra.mxu0 %v578
    %713 = vmatprep.subr.mxu0 %v581
    %714 = vmatpush1.msra.mxu0 %v580
    %715 = vmatprep.subr.mxu0 %v583
    %716 = vmatpush1.msra.mxu0 %v582
    %717 = vmatprep.subr.mxu0 %v585
    %718 = vmatpush1.msra.mxu0 %v584
    %719 = vmatprep.subr.mxu0 %v587
    %720 = vmatpush1.msra.mxu0 %v586
    %721 = vmatprep.subr.mxu0 %v589
    %722 = vmatpush1.msra.mxu0 %v588
    %723 = vmatprep.subr.mxu0 %v591
    %724 = vmatpush1.msra.mxu0 %v590
    %725 = vmatprep.subr.mxu0 %v593
    %726 = vmatpush1.msra.mxu0 %v592
    %727 = vmatprep.subr.mxu0 %v595
    %728 = vmatpush1.msra.mxu0 %v594
    %729 = vmatprep.subr.mxu0 %v597
    %730 = vmatpush1.msra.mxu0 %v596
    %731 = vmatprep.subr.mxu0 %v599
    %732 = vmatpush1.msra.mxu0 %v598
    %733 = vmatprep.subr.mxu0 %v601
    %734 = vmatpush1.msra.mxu0 %v600
    %735 = vmatprep.subr.mxu0 %v603
    %736 = vmatpush1.msra.mxu0 %v602
    %737 = vmatprep.subr.mxu0 %v605
    %738 = vmatpush1.msra.mxu0 %v604
    %739 = vmatprep.subr.mxu0 %v607
    %740 = vmatpush1.msra.mxu0 %v606
    %741 = vmatprep.subr.mxu0 %v609
    %742 = vmatpush1.msra.mxu0 %v608
    %743 = vmatprep.subr.mxu0 %v611
    %744 = vmatpush1.msra.mxu0 %v610
    %745 = vmatprep.subr.mxu0 %v613
    %746 = vmatpush1.msra.mxu0 %v612
    %747 = vmatprep.subr.mxu0 %v615
    %748 = vmatpush1.msra.mxu0 %v614
    %749 = vmatprep.subr.mxu0 %v617
    %750 = vmatpush1.msra.mxu0 %v616
    %751 = vmatprep.mubr.f32.mxu0 %v507
    %752 = vmatmul.mubr.f32.gmra.mrb[0].mxu0 %v506
    %v753 = vpop.f32.mrb[0].mxu0
    %v754 = vadd.f32 %v631, %v753
    %v755 = vpop.f32.mrb[0].mxu0
    %v756 = vadd.f32 %v635, %v755
    %757 = vmatprep.mubr.f32.mxu0 %v510
    %758 = vmatmul.mubr.f32.gmra.mrb[0].mxu0 %v509
    %v759 = vpop.f32.mrb[0].mxu0
    %v760 = vadd.f32 %v631, %v759
    %v761 = vpop.f32.mrb[0].mxu0
    %v762 = vadd.f32 %v635, %v761
    %763 = vmatprep.mubr.f32.mxu0 %v513
    %764 = vmatmul.mubr.f32.gmra.mrb[0].mxu0 %v512
    %v765 = vpop.f32.mrb[0].mxu0
    %v766 = vadd.f32 %v631, %v765
    %v767 = vpop.f32.mrb[0].mxu0
    %v768 = vadd.f32 %v635, %v767
    %769 = vmatprep.mubr.f32.mxu0 %v516
    %770 = vmatmul.mubr.f32.gmra.mrb[0].mxu0 %v515
    %v771 = vpop.f32.mrb[0].mxu0
    %v772 = vadd.f32 %v631, %v771
    %v773 = vpop.f32.mrb[0].mxu0
    %v774 = vadd.f32 %v635, %v773
    %775 = vmatprep.mubr.f32.mxu0 %v519
    %776 = vmatmul.mubr.f32.gmra.mrb[0].mxu0 %v518
    %v777 = vpop.f32.mrb[0].mxu0
    %v778 = vadd.f32 %v631, %v777
    %v779 = vpop.f32.mrb[0].mxu0
    %v780 = vadd.f32 %v635, %v779
    %781 = vmatprep.mubr.f32.mxu0 %v522
    %782 = vmatmul.mubr.f32.gmra.mrb[0].mxu0 %v521
    %v783 = vpop.f32.mrb[0].mxu0
    %v784 = vadd.f32 %v631, %v783
    %v785 = vpop.f32.mrb[0].mxu0
    %v786 = vadd.f32 %v635, %v785
    %787 = vmatprep.mubr.f32.mxu0 %v525
    %788 = vmatmul.mubr.f32.gmra.mrb[0].mxu0 %v524
    %v789 = vpop.f32.mrb[0].mxu0
    %v790 = vadd.f32 %v631, %v789
    %v791 = vpop.f32.mrb[0].mxu0
    %v792 = vadd.f32 %v635, %v791
    %793 = vmatprep.mubr.f32.mxu0 %v528
    %794 = vmatmul.mubr.f32.gmra.mrb[0].mxu0 %v527
    %v795 = vpop.f32.mrb[0].mxu0
    %v796 = vadd.f32 %v631, %v795
    %v797 = vpop.f32.mrb[0].mxu0
    %v798 = vadd.f32 %v635, %v797
    %799 = vmatprep.mubr.f32.mxu0 %v531
    %800 = vmatmul.mubr.f32.gmra.mrb[0].mxu0 %v530
    %v801 = vpop.f32.mrb[0].mxu0
    %v802 = vadd.f32 %v631, %v801
    %v803 = vpop.f32.mrb[0].mxu0
    %v804 = vadd.f32 %v635, %v803
    %805 = vmatprep.mubr.f32.mxu0 %v534
    %806 = vmatmul.mubr.f32.gmra.mrb[0].mxu0 %v533
    %v807 = vpop.f32.mrb[0].mxu0
    %v808 = vadd.f32 %v631, %v807
    %v809 = vpop.f32.mrb[0].mxu0
    %v810 = vadd.f32 %v635, %v809
    %811 = vmatprep.mubr.f32.mxu0 %v537
    %812 = vmatmul.mubr.f32.gmra.mrb[0].mxu0 %v536
    %v813 = vpop.f32.mrb[0].mxu0
    %v814 = vadd.f32 %v631, %v813
    %v815 = vpop.f32.mrb[0].mxu0
    %v816 = vadd.f32 %v635, %v815
    %817 = vmatprep.mubr.f32.mxu0 %v540
    %818 = vmatmul.mubr.f32.gmra.mrb[0].mxu0 %v539
    %v819 = vpop.f32.mrb[0].mxu0
    %v820 = vadd.f32 %v631, %v819
    %v821 = vpop.f32.mrb[0].mxu0
    %v822 = vadd.f32 %v635, %v821
    %823 = vmatprep.mubr.f32.mxu0 %v543
    %824 = vmatmul.mubr.f32.gmra.mrb[0].mxu0 %v542
    %v825 = vpop.f32.mrb[0].mxu0
    %v826 = vadd.f32 %v631, %v825
    %v827 = vpop.f32.mrb[0].mxu0
    %v828 = vadd.f32 %v635, %v827
    %829 = vmatprep.mubr.f32.mxu0 %v546
    %830 = vmatmul.mubr.f32.gmra.mrb[0].mxu0 %v545
    %v831 = vpop.f32.mrb[0].mxu0
    %v832 = vadd.f32 %v631, %v831
    %v833 = vpop.f32.mrb[0].mxu0
    %v834 = vadd.f32 %v635, %v833
    %835 = vmatprep.mubr.f32.mxu0 %v549
    %836 = vmatmul.mubr.f32.gmra.mrb[0].mxu0 %v548
    %v837 = vpop.f32.mrb[0].mxu0
    %v838 = vadd.f32 %v631, %v837
    %v839 = vpop.f32.mrb[0].mxu0
    %v840 = vadd.f32 %v635, %v839
    %841 = vmatprep.mubr.f32.mxu0 %v552
    %842 = vmatmul.mubr.f32.gmra.mrb[0].mxu0 %v551
    %v843 = vpop.f32.mrb[0].mxu0
    %v844 = vadd.f32 %v631, %v843
    %v845 = vpop.f32.mrb[0].mxu0
    %v846 = vadd.f32 %v635, %v845
    %847 = vdwg.mxu0
    %848 = vmatprep.subr.mxu0 %v619
    %849 = vmatpush1.msra.mxu0 %v618
    %850 = vmatprep.subr.mxu0 %v621
    %851 = vmatpush1.msra.mxu0 %v620
    %852 = vmatprep.subr.mxu0 %v623
    %853 = vmatpush1.msra.mxu0 %v622
    %854 = vmatprep.subr.mxu0 %v625
    %855 = vmatpush1.msra.mxu0 %v624
    %856 = vmatprep.subr.mxu0 0.0
    %857 = vmatpush1.msra.mxu0 0.0
    %858 = vmatprep.subr.mxu0 0.0
    %859 = vmatpush1.msra.mxu0 0.0
    %860 = vmatprep.subr.mxu0 0.0
    %861 = vmatpush1.msra.mxu0 0.0
    %862 = vmatprep.subr.mxu0 0.0
    %863 = vmatpush1.msra.mxu0 0.0
    %864 = vmatprep.subr.mxu0 0.0
    %865 = vmatpush1.msra.mxu0 0.0
    %866 = vmatprep.subr.mxu0 0.0
    %867 = vmatpush1.msra.mxu0 0.0
    %868 = vmatprep.subr.mxu0 0.0
    %869 = vmatpush1.msra.mxu0 0.0
    %870 = vmatprep.subr.mxu0 0.0
    %871 = vmatpush1.msra.mxu0 0.0
    %872 = vmatprep.subr.mxu0 0.0
    %873 = vmatpush1.msra.mxu0 0.0
    %874 = vmatprep.subr.mxu0 0.0
    %875 = vmatpush1.msra.mxu0 0.0
    %876 = vmatprep.subr.mxu0 0.0
    %877 = vmatpush1.msra.mxu0 0.0
    %878 = vmatprep.subr.mxu0 0.0
    %879 = vmatpush1.msra.mxu0 0.0
    %880 = vmatprep.subr.mxu0 0.0
    %881 = vmatpush1.msra.mxu0 0.0
    %882 = vmatprep.subr.mxu0 0.0
    %883 = vmatpush1.msra.mxu0 0.0
    %884 = vmatprep.subr.mxu0 0.0
    %885 = vmatpush1.msra.mxu0 0.0
    %886 = vmatprep.subr.mxu0 0.0
    %887 = vmatpush1.msra.mxu0 0.0
    %888 = vmatprep.subr.mxu0 0.0
    %889 = vmatpush1.msra.mxu0 0.0
    %890 = vmatprep.subr.mxu0 0.0
    %891 = vmatpush1.msra.mxu0 0.0
    %892 = vmatprep.subr.mxu0 0.0
    %893 = vmatpush1.msra.mxu0 0.0
    %894 = vmatprep.subr.mxu0 0.0
    %895 = vmatpush1.msra.mxu0 0.0
    %896 = vmatprep.subr.mxu0 0.0
    %897 = vmatpush1.msra.mxu0 0.0
    %898 = vmatprep.subr.mxu0 0.0
    %899 = vmatpush1.msra.mxu0 0.0
    %900 = vmatprep.subr.mxu0 0.0
    %901 = vmatpush1.msra.mxu0 0.0
    %902 = vmatprep.subr.mxu0 0.0
    %903 = vmatpush1.msra.mxu0 0.0
    %904 = vmatprep.subr.mxu0 0.0
    %905 = vmatpush1.msra.mxu0 0.0
    %906 = vmatprep.subr.mxu0 0.0
    %907 = vmatpush1.msra.mxu0 0.0
    %908 = vmatprep.subr.mxu0 0.0
    %909 = vmatpush1.msra.mxu0 0.0
    %910 = vmatprep.subr.mxu0 0.0
    %911 = vmatpush1.msra.mxu0 0.0
    %912 = vmatprep.mubr.f32.mxu0 0.0
    %913 = vmatmul.mubr.f32.gmra.mrb[0].mxu0 %v640
    %v914 = vpop.f32.mrb[0].mxu0
    %v915 = vadd.f32 %v754, %v914
    %v916 = vpop.f32.mrb[0].mxu0
    %v917 = vadd.f32 %v756, %v916
    %918 = vmatprep.mubr.f32.mxu0 0.0
    %919 = vmatmul.mubr.f32.gmra.mrb[0].mxu0 %v643
    %v920 = vpop.f32.mrb[0].mxu0
    %v921 = vadd.f32 %v760, %v920
    %v922 = vpop.f32.mrb[0].mxu0
    %v923 = vadd.f32 %v762, %v922
    %924 = vmatprep.mubr.f32.mxu0 0.0
    %925 = vmatmul.mubr.f32.gmra.mrb[0].mxu0 %v646
    %v926 = vpop.f32.mrb[0].mxu0
    %v927 = vadd.f32 %v766, %v926
    %v928 = vpop.f32.mrb[0].mxu0
    %v929 = vadd.f32 %v768, %v928
    %930 = vmatprep.mubr.f32.mxu0 0.0
    %931 = vmatmul.mubr.f32.gmra.mrb[0].mxu0 %v649
    %v932 = vpop.f32.mrb[0].mxu0
    %v933 = vadd.f32 %v772, %v932
    %v934 = vpop.f32.mrb[0].mxu0
    %v935 = vadd.f32 %v774, %v934
    %936 = vmatprep.mubr.f32.mxu0 0.0
    %937 = vmatmul.mubr.f32.gmra.mrb[0].mxu0 %v652
    %v938 = vpop.f32.mrb[0].mxu0
    %v939 = vadd.f32 %v778, %v938
    %v940 = vpop.f32.mrb[0].mxu0
    %v941 = vadd.f32 %v780, %v940
    %942 = vmatprep.mubr.f32.mxu0 0.0
    %943 = vmatmul.mubr.f32.gmra.mrb[0].mxu0 %v655
    %v944 = vpop.f32.mrb[0].mxu0
    %v945 = vadd.f32 %v784, %v944
    %v946 = vpop.f32.mrb[0].mxu0
    %v947 = vadd.f32 %v786, %v946
    %948 = vmatprep.mubr.f32.mxu0 0.0
    %949 = vmatmul.mubr.f32.gmra.mrb[0].mxu0 %v658
    %v950 = vpop.f32.mrb[0].mxu0
    %v951 = vadd.f32 %v790, %v950
    %v952 = vpop.f32.mrb[0].mxu0
    %v953 = vadd.f32 %v792, %v952
    %954 = vmatprep.mubr.f32.mxu0 0.0
    %955 = vmatmul.mubr.f32.gmra.mrb[0].mxu0 %v661
    %v956 = vpop.f32.mrb[0].mxu0
    %v957 = vadd.f32 %v796, %v956
    %v958 = vpop.f32.mrb[0].mxu0
    %v959 = vadd.f32 %v798, %v958
    %960 = vmatprep.mubr.f32.mxu0 0.0
    %961 = vmatmul.mubr.f32.gmra.mrb[0].mxu0 %v664
    %v962 = vpop.f32.mrb[0].mxu0
    %v963 = vadd.f32 %v802, %v962
    %v964 = vpop.f32.mrb[0].mxu0
    %v965 = vadd.f32 %v804, %v964
    %966 = vmatprep.mubr.f32.mxu0 0.0
    %967 = vmatmul.mubr.f32.gmra.mrb[0].mxu0 %v667
    %v968 = vpop.f32.mrb[0].mxu0
    %v969 = vadd.f32 %v808, %v968
    %v970 = vpop.f32.mrb[0].mxu0
    %v971 = vadd.f32 %v810, %v970
    %972 = vmatprep.mubr.f32.mxu0 0.0
    %973 = vmatmul.mubr.f32.gmra.mrb[0].mxu0 %v670
    %v974 = vpop.f32.mrb[0].mxu0
    %v975 = vadd.f32 %v814, %v974
    %v976 = vpop.f32.mrb[0].mxu0
    %v977 = vadd.f32 %v816, %v976
    %978 = vmatprep.mubr.f32.mxu0 0.0
    %979 = vmatmul.mubr.f32.gmra.mrb[0].mxu0 %v673
    %v980 = vpop.f32.mrb[0].mxu0
    %v981 = vadd.f32 %v820, %v980
    %v982 = vpop.f32.mrb[0].mxu0
    %v983 = vadd.f32 %v822, %v982
    %984 = vmatprep.mubr.f32.mxu0 0.0
    %985 = vmatmul.mubr.f32.gmra.mrb[0].mxu0 %v676
    %v986 = vpop.f32.mrb[0].mxu0
    %v987 = vadd.f32 %v826, %v986
    %v988 = vpop.f32.mrb[0].mxu0
    %v989 = vadd.f32 %v828, %v988
    %990 = vmatprep.mubr.f32.mxu0 0.0
    %991 = vmatmul.mubr.f32.gmra.mrb[0].mxu0 %v679
    %v992 = vpop.f32.mrb[0].mxu0
    %v993 = vadd.f32 %v832, %v992
    %v994 = vpop.f32.mrb[0].mxu0
    %v995 = vadd.f32 %v834, %v994
    %996 = vmatprep.mubr.f32.mxu0 0.0
    %997 = vmatmul.mubr.f32.gmra.mrb[0].mxu0 %v682
    %v998 = vpop.f32.mrb[0].mxu0
    %v999 = vadd.f32 %v838, %v998
    %v1000 = vpop.f32.mrb[0].mxu0
    %v1001 = vadd.f32 %v840, %v1000
    %1002 = vmatprep.mubr.f32.mxu0 0.0
    %1003 = vmatmul.mubr.f32.gmra.mrb[0].mxu0 %v685
    %v1004 = vpop.f32.mrb[0].mxu0
    %v1005 = vadd.f32 %v844, %v1004
    %v1006 = vpop.f32.mrb[0].mxu0
    %v1007 = vadd.f32 %v846, %v1006
    %1008 = vdwg.mxu0
    %v1009 = vmax.f32 %v915, 0.0
    %v1010 = vmax.f32 %v917, 0.0
    %v1011 = vmax.f32 %v921, 0.0
    %v1012 = vmax.f32 %v923, 0.0
    %v1013 = vmax.f32 %v927, 0.0
    %v1014 = vmax.f32 %v929, 0.0
    %v1015 = vmax.f32 %v933, 0.0
    %v1016 = vmax.f32 %v935, 0.0
    %v1017 = vmax.f32 %v939, 0.0
    %v1018 = vmax.f32 %v941, 0.0
    %v1019 = vmax.f32 %v945, 0.0
    %v1020 = vmax.f32 %v947, 0.0
    %v1021 = vmax.f32 %v951, 0.0
    %v1022 = vmax.f32 %v953, 0.0
    %v1023 = vmax.f32 %v957, 0.0
    %v1024 = vmax.f32 %v959, 0.0
    %v1025 = vmax.f32 %v963, 0.0
    %v1026 = vmax.f32 %v965, 0.0
    %v1027 = vmax.f32 %v969, 0.0
    %v1028 = vmax.f32 %v971, 0.0
    %v1029 = vmax.f32 %v975, 0.0
    %v1030 = vmax.f32 %v977, 0.0
    %v1031 = vmax.f32 %v981, 0.0
    %v1032 = vmax.f32 %v983, 0.0
    %v1033 = vmax.f32 %v987, 0.0
    %v1034 = vmax.f32 %v989, 0.0
    %v1035 = vmax.f32 %v993, 0.0
    %v1036 = vmax.f32 %v995, 0.0
    %v1037 = vmax.f32 %v999, 0.0
    %v1038 = vmax.f32 %v1001, 0.0
    %v1039 = vmax.f32 %v1005, 0.0
    %v1040 = vmax.f32 %v1007, 0.0
    %v1041 = vld [vmem:[#allocation7] sm:$0xff]
    %v1042 = vld [vmem:[#allocation7 + $0x8] sm:$0xff]
    %v1043 = vld [vmem:[#allocation7 + $0x10] sm:$0xff]
    %v1044 = vld [vmem:[#allocation7 + $0x18] sm:$0xff]
    %v1045 = vld [vmem:[#allocation7 + $0x20] sm:$0xff]
    %v1046 = vld [vmem:[#allocation7 + $0x28] sm:$0xff]
    %v1047 = vld [vmem:[#allocation7 + $0x30] sm:$0xff]
    %v1048 = vld [vmem:[#allocation7 + $0x38] sm:$0xff]
    %v1049 = vld [vmem:[#allocation7 + $0x40] sm:$0xff]
    %v1050 = vld [vmem:[#allocation7 + $0x48] sm:$0xff]
    %v1051 = vld [vmem:[#allocation7 + $0x50] sm:$0xff]
    %v1052 = vld [vmem:[#allocation7 + $0x58] sm:$0xff]
    %v1053 = vld [vmem:[#allocation7 + $0x60] sm:$0xff]
    %v1054 = vld [vmem:[#allocation7 + $0x68] sm:$0xff]
    %v1055 = vld [vmem:[#allocation7 + $0x70] sm:$0xff]
    %v1056 = vld [vmem:[#allocation7 + $0x78] sm:$0xff]
    %v1057 = vld [vmem:[#allocation7 + $0x80] sm:$0xff]
    %v1058 = vld [vmem:[#allocation7 + $0x88] sm:$0xff]
    %v1059 = vld [vmem:[#allocation7 + $0x90] sm:$0xff]
    %v1060 = vld [vmem:[#allocation7 + $0x98] sm:$0xff]
    %v1061 = vld [vmem:[#allocation7 + $0xa0] sm:$0xff]
    %v1062 = vld [vmem:[#allocation7 + $0xa8] sm:$0xff]
    %v1063 = vld [vmem:[#allocation7 + $0xb0] sm:$0xff]
    %v1064 = vld [vmem:[#allocation7 + $0xb8] sm:$0xff]
    %v1065 = vld [vmem:[%s6] sm:$0x1]
    %v1067 = vlaneseq
    %v1068 = vshrl.u32 %v1067, 7
    %v1069 = vsub.s32 0, %v1068
    %v1070 = vrot.slane %v1065, %v1069
    %vm1072 = vcmask 523264
    %v1074 = vsel %vm1072, %v1010, 0
    %v1077 = vsel %vm1072, %v1012, 0
    %v1080 = vsel %vm1072, %v1014, 0
    %v1083 = vsel %vm1072, %v1016, 0
    %v1086 = vsel %vm1072, %v1018, 0
    %v1089 = vsel %vm1072, %v1020, 0
    %v1092 = vsel %vm1072, %v1022, 0
    %v1095 = vsel %vm1072, %v1024, 0
    %v1098 = vsel %vm1072, %v1026, 0
    %v1101 = vsel %vm1072, %v1028, 0
    %v1104 = vsel %vm1072, %v1030, 0
    %v1107 = vsel %vm1072, %v1032, 0
    %v1110 = vsel %vm1072, %v1034, 0
    %v1113 = vsel %vm1072, %v1036, 0
    %v1116 = vsel %vm1072, %v1038, 0
    %v1119 = vsel %vm1072, %v1040, 0
    %1121 = vmatprep.subr.mxu0 0.0
    %1122 = vmatpush1.msra.mxu0 %v1041
    %1123 = vmatprep.subr.mxu0 0.0
    %1124 = vmatpush1.msra.mxu0 %v1042
    %1125 = vmatprep.subr.mxu0 0.0
    %1126 = vmatpush1.msra.mxu0 %v1043
    %1127 = vmatprep.subr.mxu0 0.0
    %1128 = vmatpush1.msra.mxu0 %v1044
    %1129 = vmatprep.subr.mxu0 0.0
    %1130 = vmatpush1.msra.mxu0 %v1045
    %1131 = vmatprep.subr.mxu0 0.0
    %1132 = vmatpush1.msra.mxu0 %v1046
    %1133 = vmatprep.subr.mxu0 0.0
    %1134 = vmatpush1.msra.mxu0 %v1047
    %1135 = vmatprep.subr.mxu0 0.0
    %1136 = vmatpush1.msra.mxu0 %v1048
    %1137 = vmatprep.subr.mxu0 0.0
    %1138 = vmatpush1.msra.mxu0 %v1049
    %1139 = vmatprep.subr.mxu0 0.0
    %1140 = vmatpush1.msra.mxu0 %v1050
    %1141 = vmatprep.subr.mxu0 0.0
    %1142 = vmatpush1.msra.mxu0 %v1051
    %1143 = vmatprep.subr.mxu0 0.0
    %1144 = vmatpush1.msra.mxu0 %v1052
    %1145 = vmatprep.subr.mxu0 0.0
    %1146 = vmatpush1.msra.mxu0 %v1053
    %1147 = vmatprep.subr.mxu0 0.0
    %1148 = vmatpush1.msra.mxu0 %v1054
    %1149 = vmatprep.subr.mxu0 0.0
    %1150 = vmatpush1.msra.mxu0 %v1055
    %1151 = vmatprep.subr.mxu0 0.0
    %1152 = vmatpush1.msra.mxu0 %v1056
    %1153 = vmatprep.subr.mxu0 0.0
    %1154 = vmatpush1.msra.mxu0 %v1057
    %1155 = vmatprep.subr.mxu0 0.0
    %1156 = vmatpush1.msra.mxu0 %v1058
    %1157 = vmatprep.subr.mxu0 0.0
    %1158 = vmatpush1.msra.mxu0 %v1059
    %1159 = vmatprep.subr.mxu0 0.0
    %1160 = vmatpush1.msra.mxu0 %v1060
    %1161 = vmatprep.subr.mxu0 0.0
    %1162 = vmatpush1.msra.mxu0 %v1061
    %1163 = vmatprep.subr.mxu0 0.0
    %1164 = vmatpush1.msra.mxu0 %v1062
    %1165 = vmatprep.subr.mxu0 0.0
    %1166 = vmatpush1.msra.mxu0 %v1063
    %1167 = vmatprep.subr.mxu0 0.0
    %1168 = vmatpush1.msra.mxu0 %v1064
    %1169 = vmatprep.subr.mxu0 0.0
    %1170 = vmatpush1.msra.mxu0 0.0
    %1171 = vmatprep.subr.mxu0 0.0
    %1172 = vmatpush1.msra.mxu0 0.0
    %1173 = vmatprep.subr.mxu0 0.0
    %1174 = vmatpush1.msra.mxu0 0.0
    %1175 = vmatprep.subr.mxu0 0.0
    %1176 = vmatpush1.msra.mxu0 0.0
    %1177 = vmatprep.subr.mxu0 0.0
    %1178 = vmatpush1.msra.mxu0 0.0
    %1179 = vmatprep.subr.mxu0 0.0
    %1180 = vmatpush1.msra.mxu0 0.0
    %1181 = vmatprep.subr.mxu0 0.0
    %1182 = vmatpush1.msra.mxu0 0.0
    %1183 = vmatprep.subr.mxu0 0.0
    %1184 = vmatpush1.msra.mxu0 0.0
    %1185 = vmatprep.mubr.f32.mxu0 %v1074
    %1186 = vmatmul.mubr.f32.gmra.mrb[0].mxu0 %v1009
    %v1187 = vpop.f32.mrb[0].mxu0
    %v1188 = vadd.f32 %v1070, %v1187
    %v1189 = vpop.f32.mrb[0].mxu0
    %1190 = vmatprep.mubr.f32.mxu0 %v1077
    %1191 = vmatmul.mubr.f32.gmra.mrb[0].mxu0 %v1011
    %v1192 = vpop.f32.mrb[0].mxu0
    %v1193 = vadd.f32 %v1070, %v1192
    %v1194 = vpop.f32.mrb[0].mxu0
    %1195 = vmatprep.mubr.f32.mxu0 %v1080
    %1196 = vmatmul.mubr.f32.gmra.mrb[0].mxu0 %v1013
    %v1197 = vpop.f32.mrb[0].mxu0
    %v1198 = vadd.f32 %v1070, %v1197
    %v1199 = vpop.f32.mrb[0].mxu0
    %1200 = vmatprep.mubr.f32.mxu0 %v1083
    %1201 = vmatmul.mubr.f32.gmra.mrb[0].mxu0 %v1015
    %v1202 = vpop.f32.mrb[0].mxu0
    %v1203 = vadd.f32 %v1070, %v1202
    %v1204 = vpop.f32.mrb[0].mxu0
    %1205 = vmatprep.mubr.f32.mxu0 %v1086
    %1206 = vmatmul.mubr.f32.gmra.mrb[0].mxu0 %v1017
    %v1207 = vpop.f32.mrb[0].mxu0
    %v1208 = vadd.f32 %v1070, %v1207
    %v1209 = vpop.f32.mrb[0].mxu0
    %1210 = vmatprep.mubr.f32.mxu0 %v1089
    %1211 = vmatmul.mubr.f32.gmra.mrb[0].mxu0 %v1019
    %v1212 = vpop.f32.mrb[0].mxu0
    %v1213 = vadd.f32 %v1070, %v1212
    %v1214 = vpop.f32.mrb[0].mxu0
    %1215 = vmatprep.mubr.f32.mxu0 %v1092
    %1216 = vmatmul.mubr.f32.gmra.mrb[0].mxu0 %v1021
    %v1217 = vpop.f32.mrb[0].mxu0
    %v1218 = vadd.f32 %v1070, %v1217
    %v1219 = vpop.f32.mrb[0].mxu0
    %1220 = vmatprep.mubr.f32.mxu0 %v1095
    %1221 = vmatmul.mubr.f32.gmra.mrb[0].mxu0 %v1023
    %v1222 = vpop.f32.mrb[0].mxu0
    %v1223 = vadd.f32 %v1070, %v1222
    %v1224 = vpop.f32.mrb[0].mxu0
    %1225 = vmatprep.mubr.f32.mxu0 %v1098
    %1226 = vmatmul.mubr.f32.gmra.mrb[0].mxu0 %v1025
    %v1227 = vpop.f32.mrb[0].mxu0
    %v1228 = vadd.f32 %v1070, %v1227
    %v1229 = vpop.f32.mrb[0].mxu0
    %1230 = vmatprep.mubr.f32.mxu0 %v1101
    %1231 = vmatmul.mubr.f32.gmra.mrb[0].mxu0 %v1027
    %v1232 = vpop.f32.mrb[0].mxu0
    %v1233 = vadd.f32 %v1070, %v1232
    %v1234 = vpop.f32.mrb[0].mxu0
    %1235 = vmatprep.mubr.f32.mxu0 %v1104
    %1236 = vmatmul.mubr.f32.gmra.mrb[0].mxu0 %v1029
    %v1237 = vpop.f32.mrb[0].mxu0
    %v1238 = vadd.f32 %v1070, %v1237
    %v1239 = vpop.f32.mrb[0].mxu0
    %1240 = vmatprep.mubr.f32.mxu0 %v1107
    %1241 = vmatmul.mubr.f32.gmra.mrb[0].mxu0 %v1031
    %v1242 = vpop.f32.mrb[0].mxu0
    %v1243 = vadd.f32 %v1070, %v1242
    %v1244 = vpop.f32.mrb[0].mxu0
    %1245 = vmatprep.mubr.f32.mxu0 %v1110
    %1246 = vmatmul.mubr.f32.gmra.mrb[0].mxu0 %v1033
    %v1247 = vpop.f32.mrb[0].mxu0
    %v1248 = vadd.f32 %v1070, %v1247
    %v1249 = vpop.f32.mrb[0].mxu0
    %1250 = vmatprep.mubr.f32.mxu0 %v1113
    %1251 = vmatmul.mubr.f32.gmra.mrb[0].mxu0 %v1035
    %v1252 = vpop.f32.mrb[0].mxu0
    %v1253 = vadd.f32 %v1070, %v1252
    %v1254 = vpop.f32.mrb[0].mxu0
    %1255 = vmatprep.mubr.f32.mxu0 %v1116
    %1256 = vmatmul.mubr.f32.gmra.mrb[0].mxu0 %v1037
    %v1257 = vpop.f32.mrb[0].mxu0
    %v1258 = vadd.f32 %v1070, %v1257
    %v1259 = vpop.f32.mrb[0].mxu0
    %1260 = vmatprep.mubr.f32.mxu0 %v1119
    %1261 = vmatmul.mubr.f32.gmra.mrb[0].mxu0 %v1039
    %v1262 = vpop.f32.mrb[0].mxu0
    %v1263 = vadd.f32 %v1070, %v1262
    %v1264 = vpop.f32.mrb[0].mxu0
    %1265 = vdwg.mxu0
    %v1266 = vmax.f32 %v1188, 0.0
    %v1267 = vmax.f32 %v1193, 0.0
    %v1268 = vmax.f32 %v1198, 0.0
    %v1269 = vmax.f32 %v1203, 0.0
    %v1270 = vmax.f32 %v1208, 0.0
    %v1271 = vmax.f32 %v1213, 0.0
    %v1272 = vmax.f32 %v1218, 0.0
    %v1273 = vmax.f32 %v1223, 0.0
    %v1274 = vmax.f32 %v1228, 0.0
    %v1275 = vmax.f32 %v1233, 0.0
    %v1276 = vmax.f32 %v1238, 0.0
    %v1277 = vmax.f32 %v1243, 0.0
    %v1278 = vmax.f32 %v1248, 0.0
    %v1279 = vmax.f32 %v1253, 0.0
    %v1280 = vmax.f32 %v1258, 0.0
    %v1281 = vmax.f32 %v1263, 0.0
    %v1282 = vld [vmem:[%s7] sm:$0x1]
    %v1283 = vld [vmem:[#allocation2] sm:$0x1]
    %1285 = vset.pattern.permute.xlu0 0
    %1286 = vperm.xlu0 %1285, %v1283
    %v1287 = vpop.permute.xlu0 %1286
    %v1289 = vlaneseq
    %v1290 = vshrl.u32 %v1289, 7
    %v1291 = vsub.s32 0, %v1290
    %v1292 = vrot.slane %v1287, %v1291
    %1293 = vmatprep.subr.mxu0 0.0
    %1294 = vmatpush1.xpose.msra.mxu0 %v1266
    %1295 = vmatprep.subr.mxu0 0.0
    %1296 = vmatpush1.xpose.msra.mxu0 %v1267
    %1297 = vmatprep.subr.mxu0 0.0
    %1298 = vmatpush1.xpose.msra.mxu0 %v1268
    %1299 = vmatprep.subr.mxu0 0.0
    %1300 = vmatpush1.xpose.msra.mxu0 %v1269
    %1301 = vmatprep.subr.mxu0 0.0
    %1302 = vmatpush1.xpose.msra.mxu0 %v1270
    %1303 = vmatprep.subr.mxu0 0.0
    %1304 = vmatpush1.xpose.msra.mxu0 %v1271
    %1305 = vmatprep.subr.mxu0 0.0
    %1306 = vmatpush1.xpose.msra.mxu0 %v1272
    %1307 = vmatprep.subr.mxu0 0.0
    %1308 = vmatpush1.xpose.msra.mxu0 %v1273
    %1309 = vmatprep.subr.mxu0 0.0
    %1310 = vmatpush1.xpose.msra.mxu0 %v1274
    %1311 = vmatprep.subr.mxu0 0.0
    %1312 = vmatpush1.xpose.msra.mxu0 %v1275
    %1313 = vmatprep.subr.mxu0 0.0
    %1314 = vmatpush1.xpose.msra.mxu0 %v1276
    %1315 = vmatprep.subr.mxu0 0.0
    %1316 = vmatpush1.xpose.msra.mxu0 %v1277
    %1317 = vmatprep.subr.mxu0 0.0
    %1318 = vmatpush1.xpose.msra.mxu0 %v1278
    %1319 = vmatprep.subr.mxu0 0.0
    %1320 = vmatpush1.xpose.msra.mxu0 %v1279
    %1321 = vmatprep.subr.mxu0 0.0
    %1322 = vmatpush1.xpose.msra.mxu0 %v1280
    %1323 = vmatprep.subr.mxu0 0.0
    %1324 = vmatpush1.xpose.msra.mxu0 %v1281
    %1325 = vmatprep.subr.mxu0 0.0
    %1326 = vmatpush1.xpose.msra.mxu0 0.0
    %1327 = vmatprep.subr.mxu0 0.0
    %1328 = vmatpush1.xpose.msra.mxu0 0.0
    %1329 = vmatprep.subr.mxu0 0.0
    %1330 = vmatpush1.xpose.msra.mxu0 0.0
    %1331 = vmatprep.subr.mxu0 0.0
    %1332 = vmatpush1.xpose.msra.mxu0 0.0
    %1333 = vmatprep.subr.mxu0 0.0
    %1334 = vmatpush1.xpose.msra.mxu0 0.0
    %1335 = vmatprep.subr.mxu0 0.0
    %1336 = vmatpush1.xpose.msra.mxu0 0.0
    %1337 = vmatprep.subr.mxu0 0.0
    %1338 = vmatpush1.xpose.msra.mxu0 0.0
    %1339 = vmatprep.subr.mxu0 0.0
    %1340 = vmatpush1.xpose.msra.mxu0 0.0
    %1341 = vmatprep.subr.mxu0 0.0
    %1342 = vmatpush1.xpose.msra.mxu0 0.0
    %1343 = vmatprep.subr.mxu0 0.0
    %1344 = vmatpush1.xpose.msra.mxu0 0.0
    %1345 = vmatprep.subr.mxu0 0.0
    %1346 = vmatpush1.xpose.msra.mxu0 0.0
    %1347 = vmatprep.subr.mxu0 0.0
    %1348 = vmatpush1.xpose.msra.mxu0 0.0
    %1349 = vmatprep.subr.mxu0 0.0
    %1350 = vmatpush1.xpose.msra.mxu0 0.0
    %1351 = vmatprep.subr.mxu0 0.0
    %1352 = vmatpush1.xpose.msra.mxu0 0.0
    %1353 = vmatprep.subr.mxu0 0.0
    %1354 = vmatpush1.xpose.msra.mxu0 0.0
    %1355 = vmatprep.subr.mxu0 0.0
    %1356 = vmatpush1.xpose.msra.mxu0 0.0
    %1357 = vmatprep.mubr.f32.mxu0 0.0
    %1358 = vmatmul.mubr.f32.gmra.mrb[0].mxu0 %v1282
    %v1359 = vpop.f32.mrb[0].mxu0
    %v1360 = vadd.f32 %v1292, %v1359
    %v1361 = vpop.f32.mrb[0].mxu0
    %1362 = vdwg.mxu0
    %1363 = vst [vmem:[%s9] sm:$0x1] %v1360
    // Predicated region
    $region50: #{predictor_forward.1} parent=1 // pred_check
      _
    $region51: #{predictor_forward.1} parent=1 // pred_check_branch
      %1365 = sbr.rel (0) target = $region53
    $region52: #{predictor_forward.1} parent=1 // pred_region
      _
    $region53: #{predictor_forward.1} parent=1 // pred_fallthru
      _
    // Predicated region
    $region54: #{predictor_forward.1} parent=1 // pred_check
      _
    $region55: #{predictor_forward.1} parent=1 // pred_check_branch
      %1367 = sbr.rel (0) target = $region57
    $region56: #{predictor_forward.1} parent=1 // pred_region
      _
    $region57: #{predictor_forward.1} parent=1 // pred_fallthru
      _
    %1368 = vsyncpa [#allocation4], 1
    %1369 = vsyncpa [#allocation6], 1

</llo_original>
